<compile_context>
chip_gen: v6e
topology: v6e:2x2x1
jax: 0.10.0
libtpu: 0.0.40
codegen_flags: <defaults>
</compile_context>

<pallas_src>
import functools

import jax
import jax.numpy as jnp
from jax.experimental import pallas as pl
from jax.experimental.pallas import tpu as pltpu

PAD = 0
LN_EPS = 1e-5          # torch.nn.LayerNorm default
NEG_BIG = -1e30        # finite "-inf" for masked attention scores


# ----------------------------------------------------------------------------
# Sinusoid position encoding table (matches get_sinusoid_encoding_table)
# ----------------------------------------------------------------------------
def get_sinusoid_encoding_table(n_position, d_hid, padding_idx=None):
    pos = jnp.arange(n_position, dtype=jnp.float32)[:, None]            # (P, 1)
    hid = jnp.arange(d_hid)[None, :]                                    # (1, D)
    angle = pos / jnp.power(
        jnp.float32(10000.0), (2.0 * (hid // 2)).astype(jnp.float32) / d_hid)
    even = (jnp.arange(d_hid) % 2) == 0
    table = jnp.where(even[None, :], jnp.sin(angle), jnp.cos(angle))
    if padding_idx is not None:
        table = table.at[padding_idx].set(0.0)
    return table.astype(jnp.float32)


def _layer_norm(y, gamma, beta):
    mu = jnp.mean(y, axis=-1, keepdims=True)
    var = jnp.mean((y - mu) ** 2, axis=-1, keepdims=True)
    return (y - mu) * jax.lax.rsqrt(var + LN_EPS) * gamma + beta


# ----------------------------------------------------------------------------
# Fused decoder-stack kernel: all FFTBlocks of all layers for one batch block
# ----------------------------------------------------------------------------
def decoder_stack_kernel(x_ref, kb_ref, np_ref,
                         wqkv_ref, bqkv_ref, wo_ref, bo_ref, g1_ref, be1_ref,
                         w1_ref, b1_ref, w2_ref, b2_ref, g2_ref, be2_ref,
                         o_ref, *, n_head, d_k, d_v, conv_k, weights_resident):
    l = pl.program_id(1)
    bt, S, D = o_ref.shape
    pad = (conv_k - 1) // 2
    Hdk = n_head * d_k
    bf16 = jnp.bfloat16

    # Layer 0: seed the running activation directly in the output block.
    # The output block index is constant along the layer axis -> it stays
    # VMEM-resident across layers and is written back only when the batch
    # block changes (layer axis MUST stay "arbitrary").
    @pl.when(l == 0)
    def _():
        o_ref[...] = x_ref[...]

    # Per-layer parameters.  Streamed mode: the BlockSpec already selected the
    # layer (leading size 1).  Resident mode: the whole (L, ...) stack is
    # pinned in VMEM; select the layer here with a dynamic index.
    lsel = l if weights_resident else 0
    w_qkv = wqkv_ref[lsel]           # (D, 2*H*dk + H*dv) bf16, q pre-scaled
    b_qkv = bqkv_ref[lsel]           # (1, 2*H*dk + H*dv) f32, bq pre-scaled
    wo = wo_ref[lsel]                # (H, d_v, D)        bf16
    bo = bo_ref[lsel]                # (1, D)
    g1, be1 = g1_ref[lsel], be1_ref[lsel]
    w1 = w1_ref[lsel]                # (K*D, Dff)         bf16
    b1 = b1_ref[lsel]                # (1, Dff)
    w2 = w2_ref[lsel]                # (Dff, D)           bf16
    b2 = b2_ref[lsel]
    g2, be2 = g2_ref[lsel], be2_ref[lsel]

    row = jax.lax.broadcasted_iota(jnp.int32, (S, 1), 0)   # sequence index

    @pl.loop(0, bt)                  # bounded live ranges vs. static unroll
    def _(i):
        x = o_ref[i]                 # (S, D) f32 running activation
        kb = kb_ref[i]               # (1, S) additive key-pad bias {0, -1e30}
        npad = np_ref[i]             # (S, 1) non-pad query mask (float)

        # --- multi-head self-attention: fused QKV, bf16 MXU, f32 acc --------
        # TODO(synk): for production S (~1024+) add a flash-style sequence-
        # tiled attention path so (S,S) scores / (S,Dff) h1 stay bounded.
        qkv = jnp.dot(x.astype(bf16), w_qkv,
                      preferred_element_type=jnp.float32) + b_qkv
        proj = None
        for h in range(n_head):
            qh = qkv[:, h * d_k:(h + 1) * d_k].astype(bf16)
            kh = qkv[:, Hdk + h * d_k:Hdk + (h + 1) * d_k].astype(bf16)
            vh = qkv[:, 2 * Hdk + h * d_v:2 * Hdk + (h + 1) * d_v].astype(bf16)
            scores = jax.lax.dot_general(
                qh, kh, (((1,), (1,)), ((), ())),
                preferred_element_type=jnp.float32) + kb        # (S, S)
            m = jnp.max(scores, axis=-1, keepdims=True)
            p = jnp.exp(scores - m)
            inv = pl.reciprocal(jnp.sum(p, axis=-1, keepdims=True), approx=True)
            attn = p * inv                                      # masked softmax
            head = jnp.dot(attn.astype(bf16), vh,
                           preferred_element_type=jnp.float32)  # (S, d_v)
            contrib = jnp.dot(head.astype(bf16), wo[h],
                              preferred_element_type=jnp.float32)
            proj = contrib if proj is None else proj + contrib
        # dropout -> identity (eval)
        x1 = _layer_norm(proj + bo + x, g1, be1) * npad

        # --- position-wise FFN: Conv1d(K, pad) -> ReLU -> Conv1d(1) ---------
        # conv as ONE (S, K*D) @ (K*D, Dff) matmul: roll+mask the D-wide INPUT
        # per tap (cheap) and let the MXU accumulate the K partial sums.
        pieces = []
        for k in range(conv_k):
            d = k - pad                       # output[s] uses x1[s + d]
            if d == 0:
                pieces.append(x1.astype(bf16))
            else:
                rolled = pltpu.roll(x1, (-d) % S, axis=0)
                mask = (row < (S - d)) if d > 0 else (row >= (-d))
                pieces.append(jnp.where(mask, rolled, 0.0).astype(bf16))
        x_stack = jnp.concatenate(pieces, axis=-1)              # (S, K*D) bf16
        h1 = jnp.maximum(
            jnp.dot(x_stack, w1, preferred_element_type=jnp.float32) + b1, 0.0)
        y = jnp.dot(h1.astype(bf16), w2,
                    preferred_element_type=jnp.float32) + b2
        # dropout -> identity (eval)
        x2 = _layer_norm(y + x1, g2, be2) * npad

        o_ref[i] = x2


# ----------------------------------------------------------------------------
# Wrapper: fuse / stack per-layer weights (once) and launch one pallas_call
# ----------------------------------------------------------------------------
_STACKED_ORDER = ("w_qkv", "b_qkv", "wo", "bo", "g1", "be1",
                  "w1", "b1", "w2", "b2", "g2", "be2")


def _fuse_layer(p):
    H, D, d_k = p["wq"].shape
    d_v = p["wv"].shape[2]
    K = p["w1"].shape[0]
    inv_temp = 1.0 / float(d_k) ** 0.5
    bf16 = jnp.bfloat16
    # fold 1/sqrt(d_k) into Wq / bq (pure weight prep)
    wq = jnp.transpose(p["wq"], (1, 0, 2)).reshape(D, H * d_k) * inv_temp
    wk = jnp.transpose(p["wk"], (1, 0, 2)).reshape(D, H * d_k)
    wv = jnp.transpose(p["wv"], (1, 0, 2)).reshape(D, H * d_v)
    bq = p["bq"].reshape(1, H * d_k) * inv_temp
    bk = p["bk"].reshape(1, H * d_k)
    bv = p["bv"].reshape(1, H * d_v)
    fused = {
        "w_qkv": jnp.concatenate([wq, wk, wv], axis=1).astype(bf16),
        "b_qkv": jnp.concatenate([bq, bk, bv], axis=1),
        "wo": p["wo"].astype(bf16),                        # (H, d_v, D)
        "bo": p["bo"], "g1": p["g1"], "be1": p["be1"],
        "w1": p["w1"].reshape(K * D, -1).astype(bf16),     # (K*D, Dff)
        "b1": p["b1"],
        "w2": p["w2"].astype(bf16), "b2": p["b2"],
        "g2": p["g2"], "be2": p["be2"],
    }
    return fused, (H, d_k, d_v, K)


def _stack_layers(layers):
    fused_list, meta = [], None
    for p in layers:
        f, meta = _fuse_layer(p)
        fused_list.append(f)
    stacked = {k: jnp.stack([f[k] for f in fused_list], axis=0)
               for k in _STACKED_ORDER}
    return stacked, meta


def prepare_decoder(params):
    """One-time weight fuse/stack — hoisted out of the per-call hot path."""
    stacked, meta = _stack_layers(params["layers"])
    return {"pos_table": params["pos_table"], "stacked": stacked, "meta": meta}


def decoder_stack(x, key_bias, non_pad, stacked, meta, *, batch_tile=None,
                  weights_resident=False, vmem_limit_bytes=48 * 1024 * 1024):
    B, S, D = x.shape
    L = stacked["w_qkv"].shape[0]
    H, d_k, d_v, conv_k = meta
    pad = (conv_k - 1) // 2
    assert S > pad, "roll/mask conv path requires S > (K-1)//2"
    if batch_tile is None:
        # keep >= 2 batch blocks so the "parallel" axis feeds both v7x cores
        bt = B // 2 if (B % 2 == 0 and B >= 2) else B
    else:
        bt = batch_tile
    assert B % bt == 0
    weights = [stacked[k] for k in _STACKED_ORDER]

    act_spec = pl.BlockSpec((bt, S, D), lambda bb, l: (bb, 0, 0))

    def layer_spec(arr):
        nd = arr.ndim
        if weights_resident:
            # whole weight stack pinned VMEM-resident (v5e/v6e: 128 MiB VMEM)
            return pl.BlockSpec(arr.shape, lambda bb, l, _nd=nd: (0,) * _nd)
        return pl.BlockSpec((1,) + arr.shape[1:],
                            lambda bb, l, _nd=nd: (l,) + (0,) * (_nd - 1))

    in_specs = [
        act_spec,                                             # activations
        pl.BlockSpec((bt, 1, S), lambda bb, l: (bb, 0, 0)),   # key-pad bias
        pl.BlockSpec((bt, S, 1), lambda bb, l: (bb, 0, 0)),   # non-pad mask
    ] + [layer_spec(w) for w in weights]

    kernel = functools.partial(decoder_stack_kernel, n_head=H, d_k=d_k,
                               d_v=d_v, conv_k=conv_k,
                               weights_resident=weights_resident)
    # TODO(synk): for production FastSpeech sizes (S ~ 1000+, D=256) add a
    # flash-style sequence-tiled attention path and re-derive bt /
    # vmem_limit_bytes per generation (v7x has only 64 MiB VMEM).
    return pl.pallas_call(
        kernel,
        out_shape=jax.ShapeDtypeStruct((B, S, D), jnp.float32),
        grid=(B // bt, L),                       # layer axis innermost
        in_specs=in_specs,
        out_specs=act_spec,                      # output block = running act
        compiler_params=pltpu.CompilerParams(
            dimension_semantics=("parallel", "arbitrary"),
            vmem_limit_bytes=vmem_limit_bytes),
    )(x, key_bias, non_pad, *weights)


def decoder_forward(enc_seq, enc_pos, prepared, *, batch_tile=None,
                    weights_resident=False):
    # position-encoding lookup kept as XLA glue (embedding gather)
    x = enc_seq + prepared["pos_table"][enc_pos]
    key_bias = jnp.where(enc_pos == PAD, NEG_BIG, 0.0).astype(
        jnp.float32)[:, None, :]                                # (B, 1, S)
    non_pad = (enc_pos != PAD).astype(jnp.float32)[:, :, None]  # (B, S, 1)
    return decoder_stack(x, key_bias, non_pad, prepared["stacked"],
                         prepared["meta"], batch_tile=batch_tile,
                         weights_resident=weights_resident)


# ----------------------------------------------------------------------------
# Parameter construction (deterministic synthetic init, raw per-layer f32)
# ----------------------------------------------------------------------------
def init_params(key, *, n_layers, n_head, d_model, d_k, d_v, d_inner,
                len_max_seq, conv_k=9):
    n_position = len_max_seq + 1
    params = {"pos_table": get_sinusoid_encoding_table(n_position, d_model,
                                                       padding_idx=0),
              "layers": []}
    for _ in range(n_layers):
        key, *ks = jax.random.split(key, 9)
        scale = 0.05
        layer = {
            "wq": scale * jax.random.normal(ks[0], (n_head, d_model, d_k), jnp.float32),
            "bq": scale * jax.random.normal(ks[1], (n_head, 1, d_k), jnp.float32),
            "wk": scale * jax.random.normal(ks[2], (n_head, d_model, d_k), jnp.float32),
            "bk": scale * jax.random.normal(ks[3], (n_head, 1, d_k), jnp.float32),
            "wv": scale * jax.random.normal(ks[4], (n_head, d_model, d_v), jnp.float32),
            "bv": scale * jax.random.normal(ks[5], (n_head, 1, d_v), jnp.float32),
            "wo": scale * jax.random.normal(ks[6], (n_head, d_v, d_model), jnp.float32),
            "bo": jnp.zeros((1, d_model), jnp.float32),
            "g1": jnp.ones((1, d_model), jnp.float32),
            "be1": jnp.zeros((1, d_model), jnp.float32),
            "w1": scale * jax.random.normal(ks[7], (conv_k, d_model, d_inner), jnp.float32),
            "b1": jnp.zeros((1, d_inner), jnp.float32),
            "w2": scale * jax.random.normal(key, (d_inner, d_model), jnp.float32),
            "b2": jnp.zeros((1, d_model), jnp.float32),
            "g2": jnp.ones((1, d_model), jnp.float32),
            "be2": jnp.zeros((1, d_model), jnp.float32),
        }
        params["layers"].append(layer)
    return params


# ----------------------------------------------------------------------------
# Pure-JAX reference (same math, same bf16-input / f32-acc matmul precision)
# ----------------------------------------------------------------------------
def _ref_block(x, pos, p):
    B, S, D = x.shape
    bf16 = jnp.bfloat16
    key_bias = jnp.where(pos == PAD, NEG_BIG, 0.0).astype(
        jnp.float32)[:, None, None, :]                          # (B,1,1,S)
    non_pad = (pos != PAD).astype(jnp.float32)[..., None]       # (B,S,1)
    d_k = p["wq"].shape[2]
    xb = x.astype(bf16)
    q = jnp.einsum("bsd,hdk->bhsk", xb, p["wq"].astype(bf16),
                   preferred_element_type=jnp.float32) + p["bq"][None]
    k = jnp.einsum("bsd,hdk->bhsk", xb, p["wk"].astype(bf16),
                   preferred_element_type=jnp.float32) + p["bk"][None]
    v = jnp.einsum("bsd,hdv->bhsv", xb, p["wv"].astype(bf16),
                   preferred_element_type=jnp.float32) + p["bv"][None]
    scores = jnp.einsum("bhsk,bhtk->bhst", q.astype(bf16), k.astype(bf16),
                        preferred_element_type=jnp.float32) / (d_k ** 0.5)
    attn = jax.nn.softmax(scores + key_bias, axis=-1)
    heads = jnp.einsum("bhst,bhtv->bhsv", attn.astype(bf16), v.astype(bf16),
                       preferred_element_type=jnp.float32)
    proj = jnp.einsum("bhsv,hvd->bsd", heads.astype(bf16), p["wo"].astype(bf16),
                      preferred_element_type=jnp.float32) + p["bo"][None]
    x1 = _layer_norm(proj + x, p["g1"][None], p["be1"][None]) * non_pad
    K = p["w1"].shape[0]
    pad = (K - 1) // 2
    xp = jnp.pad(x1, ((0, 0), (pad, pad), (0, 0)))
    h = jnp.zeros((B, S, p["w1"].shape[2]), jnp.float32)
    for kk in range(K):
        h = h + jnp.einsum("bsd,df->bsf", xp[:, kk:kk + S, :].astype(bf16),
                           p["w1"][kk].astype(bf16),
                           preferred_element_type=jnp.float32)
    h = jnp.maximum(h + p["b1"][None], 0.0)
    y = jnp.einsum("bsf,fd->bsd", h.astype(bf16), p["w2"].astype(bf16),
                   preferred_element_type=jnp.float32) + p["b2"][None]
    x2 = _layer_norm(y + x1, p["g2"][None], p["be2"][None]) * non_pad
    return x2


def _ref_decoder(enc_seq, enc_pos, params):
    x = enc_seq + params["pos_table"][enc_pos]
    for layer in params["layers"]:
        x = _ref_block(x, enc_pos, layer)
    return x


# ----------------------------------------------------------------------------
if __name__ == "__main__":
    # Small hyperparameters consistent with the module's constructor
    B, S = 2, 8
    d_model, n_head = 32, 2
    d_k = d_v = d_model // n_head
    d_inner = 64
    n_layers = 2
    len_max_seq = 32

    key = jax.random.PRNGKey(0)
    k_seq, k_par = jax.random.split(key)

    enc_seq = jax.random.normal(k_seq, (B, S, d_model), jnp.float32)
    # enc_pos: 1..len for valid frames, 0 (PAD) afterwards
    lengths = jnp.array([S, 5], jnp.int32)
    base = jnp.arange(1, S + 1, dtype=jnp.int32)[None, :]
    enc_pos = jnp.where(base <= lengths[:, None], base, 0)       # (B, S) int32

    params = init_params(k_par, n_layers=n_layers, n_head=n_head,
                         d_model=d_model, d_k=d_k, d_v=d_v, d_inner=d_inner,
                         len_max_seq=len_max_seq)
    prepared = prepare_decoder(params)          # one-time weight fuse (hoisted)

    ref = jax.block_until_ready(_ref_decoder(enc_seq, enc_pos, params))

    # default: streamed per-layer weights (v7x-friendly), bt=B//2 -> grid=(2,L)
    out = jax.block_until_ready(decoder_forward(enc_seq, enc_pos, prepared))
    assert out.shape == (B, S, d_model) and out.dtype == jnp.float32
    assert bool(jnp.all(jnp.isfinite(out)))
    assert bool(jnp.allclose(out, ref, rtol=2e-2, atol=2e-2)), \
        "mismatch vs reference (streamed weights)"

    # optional VMEM-resident weight mode (v5e/v6e, 128 MiB VMEM)
    out_res = jax.block_until_ready(
        decoder_forward(enc_seq, enc_pos, prepared, weights_resident=True))
    assert bool(jnp.allclose(out_res, ref, rtol=2e-2, atol=2e-2)), \
        "mismatch vs reference (resident weights)"

    print("KERNEL_OK")
</pallas_src>

<mosaic_0001>
module attributes {stable_mosaic.version = 11 : i64} {
  func.func @decoder_stack_kernel(%arg0: i32, %arg1: i32, %arg2: memref<1x8x32xf32, #tpu.memory_space<vmem>>, %arg3: memref<1x1x8xf32, #tpu.memory_space<vmem>>, %arg4: memref<1x8x1xf32, #tpu.memory_space<vmem>>, %arg5: memref<1x32x96xbf16, #tpu.memory_space<vmem>>, %arg6: memref<1x1x96xf32, #tpu.memory_space<vmem>>, %arg7: memref<1x2x16x32xbf16, #tpu.memory_space<vmem>>, %arg8: memref<1x1x32xf32, #tpu.memory_space<vmem>>, %arg9: memref<1x1x32xf32, #tpu.memory_space<vmem>>, %arg10: memref<1x1x32xf32, #tpu.memory_space<vmem>>, %arg11: memref<1x288x64xbf16, #tpu.memory_space<vmem>>, %arg12: memref<1x1x64xf32, #tpu.memory_space<vmem>>, %arg13: memref<1x64x32xbf16, #tpu.memory_space<vmem>>, %arg14: memref<1x1x32xf32, #tpu.memory_space<vmem>>, %arg15: memref<1x1x32xf32, #tpu.memory_space<vmem>>, %arg16: memref<1x1x32xf32, #tpu.memory_space<vmem>>, %arg17: memref<1x8x32xf32, #tpu.memory_space<vmem>>) attributes {dimension_semantics = [#tpu.dimension_semantics<parallel>, #tpu.dimension_semantics<arbitrary>], iteration_bounds = array<i64: 2, 2>, scalar_prefetch = 0 : i64, scratch_operands = 0 : i64, tpu.core_type = #tpu.core_type<tc>, window_params = [{transform_indices = @transform_0, window_bounds = array<i64: 1, 8, 32>}, {transform_indices = @transform_1, window_bounds = array<i64: 1, 1, 8>}, {transform_indices = @transform_2, window_bounds = array<i64: 1, 8, 1>}, {transform_indices = @transform_3, window_bounds = array<i64: 1, 32, 96>}, {transform_indices = @transform_4, window_bounds = array<i64: 1, 1, 96>}, {transform_indices = @transform_5, window_bounds = array<i64: 1, 2, 16, 32>}, {transform_indices = @transform_6, window_bounds = array<i64: 1, 1, 32>}, {transform_indices = @transform_7, window_bounds = array<i64: 1, 1, 32>}, {transform_indices = @transform_8, window_bounds = array<i64: 1, 1, 32>}, {transform_indices = @transform_9, window_bounds = array<i64: 1, 288, 64>}, {transform_indices = @transform_10, window_bounds = array<i64: 1, 1, 64>}, {transform_indices = @transform_11, window_bounds = array<i64: 1, 64, 32>}, {transform_indices = @transform_12, window_bounds = array<i64: 1, 1, 32>}, {transform_indices = @transform_13, window_bounds = array<i64: 1, 1, 32>}, {transform_indices = @transform_14, window_bounds = array<i64: 1, 1, 32>}, {transform_indices = @transform_15, window_bounds = array<i64: 1, 8, 32>}]} {
    %c0_i32 = arith.constant 0 : i32
    %0 = arith.cmpi eq, %arg1, %c0_i32 : i32
    %1 = arith.extui %0 : i1 to i32
    %c0_i32_0 = arith.constant 0 : i32
    %2 = arith.cmpi ne, %1, %c0_i32_0 : i32
    scf.if %2 {
      %c0_89 = arith.constant 0 : index
      %c0_90 = arith.constant 0 : index
      %c0_91 = arith.constant 0 : index
      %225 = vector.load %arg2[%c0_89, %c0_90, %c0_91] : memref<1x8x32xf32, #tpu.memory_space<vmem>>, vector<1x8x32xf32>
      %c0_92 = arith.constant 0 : index
      %c0_93 = arith.constant 0 : index
      %c0_94 = arith.constant 0 : index
      %226 = vector.load %arg17[%c0_92, %c0_93, %c0_94] : memref<1x8x32xf32, #tpu.memory_space<vmem>>, vector<1x8x32xf32>
      tpu.vector_store %arg17[%c0_92, %c0_93, %c0_94], %225 {strides = array<i32>} : memref<1x8x32xf32, #tpu.memory_space<vmem>>, vector<1x8x32xf32>,
    } else {
    }
    %c0 = arith.constant 0 : index
    %c0_1 = arith.constant 0 : index
    %c0_2 = arith.constant 0 : index
    %3 = vector.load %arg5[%c0, %c0_1, %c0_2] : memref<1x32x96xbf16, #tpu.memory_space<vmem>>, vector<1x32x96xbf16>
    %4 = vector.shape_cast %3 : vector<1x32x96xbf16> to vector<32x96xbf16>
    %c0_3 = arith.constant 0 : index
    %c0_4 = arith.constant 0 : index
    %c0_5 = arith.constant 0 : index
    %5 = vector.load %arg6[%c0_3, %c0_4, %c0_5] : memref<1x1x96xf32, #tpu.memory_space<vmem>>, vector<1x1x96xf32>
    %6 = vector.shape_cast %5 : vector<1x1x96xf32> to vector<1x96xf32>
    %c0_6 = arith.constant 0 : index
    %c0_7 = arith.constant 0 : index
    %c0_8 = arith.constant 0 : index
    %c0_9 = arith.constant 0 : index
    %7 = vector.load %arg7[%c0_6, %c0_7, %c0_8, %c0_9] : memref<1x2x16x32xbf16, #tpu.memory_space<vmem>>, vector<1x2x16x32xbf16>
    %8 = vector.shape_cast %7 : vector<1x2x16x32xbf16> to vector<2x16x32xbf16>
    %c0_10 = arith.constant 0 : index
    %c0_11 = arith.constant 0 : index
    %c0_12 = arith.constant 0 : index
    %9 = vector.load %arg8[%c0_10, %c0_11, %c0_12] : memref<1x1x32xf32, #tpu.memory_space<vmem>>, vector<1x1x32xf32>
    %10 = vector.shape_cast %9 : vector<1x1x32xf32> to vector<1x32xf32>
    %c0_13 = arith.constant 0 : index
    %c0_14 = arith.constant 0 : index
    %c0_15 = arith.constant 0 : index
    %11 = vector.load %arg9[%c0_13, %c0_14, %c0_15] : memref<1x1x32xf32, #tpu.memory_space<vmem>>, vector<1x1x32xf32>
    %12 = vector.shape_cast %11 : vector<1x1x32xf32> to vector<1x32xf32>
    %c0_16 = arith.constant 0 : index
    %c0_17 = arith.constant 0 : index
    %c0_18 = arith.constant 0 : index
    %13 = vector.load %arg10[%c0_16, %c0_17, %c0_18] : memref<1x1x32xf32, #tpu.memory_space<vmem>>, vector<1x1x32xf32>
    %14 = vector.shape_cast %13 : vector<1x1x32xf32> to vector<1x32xf32>
    %c0_19 = arith.constant 0 : index
    %c0_20 = arith.constant 0 : index
    %c0_21 = arith.constant 0 : index
    %15 = vector.load %arg11[%c0_19, %c0_20, %c0_21] : memref<1x288x64xbf16, #tpu.memory_space<vmem>>, vector<1x288x64xbf16>
    %16 = vector.shape_cast %15 : vector<1x288x64xbf16> to vector<288x64xbf16>
    %c0_22 = arith.constant 0 : index
    %c0_23 = arith.constant 0 : index
    %c0_24 = arith.constant 0 : index
    %17 = vector.load %arg12[%c0_22, %c0_23, %c0_24] : memref<1x1x64xf32, #tpu.memory_space<vmem>>, vector<1x1x64xf32>
    %18 = vector.shape_cast %17 : vector<1x1x64xf32> to vector<1x64xf32>
    %c0_25 = arith.constant 0 : index
    %c0_26 = arith.constant 0 : index
    %c0_27 = arith.constant 0 : index
    %19 = vector.load %arg13[%c0_25, %c0_26, %c0_27] : memref<1x64x32xbf16, #tpu.memory_space<vmem>>, vector<1x64x32xbf16>
    %20 = vector.shape_cast %19 : vector<1x64x32xbf16> to vector<64x32xbf16>
    %c0_28 = arith.constant 0 : index
    %c0_29 = arith.constant 0 : index
    %c0_30 = arith.constant 0 : index
    %21 = vector.load %arg14[%c0_28, %c0_29, %c0_30] : memref<1x1x32xf32, #tpu.memory_space<vmem>>, vector<1x1x32xf32>
    %22 = vector.shape_cast %21 : vector<1x1x32xf32> to vector<1x32xf32>
    %c0_31 = arith.constant 0 : index
    %c0_32 = arith.constant 0 : index
    %c0_33 = arith.constant 0 : index
    %23 = vector.load %arg15[%c0_31, %c0_32, %c0_33] : memref<1x1x32xf32, #tpu.memory_space<vmem>>, vector<1x1x32xf32>
    %24 = vector.shape_cast %23 : vector<1x1x32xf32> to vector<1x32xf32>
    %c0_34 = arith.constant 0 : index
    %c0_35 = arith.constant 0 : index
    %c0_36 = arith.constant 0 : index
    %25 = vector.load %arg16[%c0_34, %c0_35, %c0_36] : memref<1x1x32xf32, #tpu.memory_space<vmem>>, vector<1x1x32xf32>
    %26 = vector.shape_cast %25 : vector<1x1x32xf32> to vector<1x32xf32>
    %27 = tpu.iota {dimensions = array<i32: 0>} : vector<8x1xi32>
    %c0_i32_37 = arith.constant 0 : i32
    %c1_i32 = arith.constant 1 : i32
    %28 = arith.muli %c0_i32_37, %c1_i32 : i32
    %c0_i32_38 = arith.constant 0 : i32
    %29 = arith.addi %c0_i32_38, %28 : i32
    %30 = arith.index_cast %29 : i32 to index
    %c0_39 = arith.constant 0 : index
    %c0_40 = arith.constant 0 : index
    %31 = vector.load %arg17[%30, %c0_39, %c0_40] : memref<1x8x32xf32, #tpu.memory_space<vmem>>, vector<1x8x32xf32>
    %32 = vector.shape_cast %31 : vector<1x8x32xf32> to vector<8x32xf32>
    %33 = arith.index_cast %29 : i32 to index
    %c0_41 = arith.constant 0 : index
    %c0_42 = arith.constant 0 : index
    %34 = vector.load %arg3[%33, %c0_41, %c0_42] : memref<1x1x8xf32, #tpu.memory_space<vmem>>, vector<1x1x8xf32>
    %35 = vector.shape_cast %34 : vector<1x1x8xf32> to vector<1x8xf32>
    %36 = arith.index_cast %29 : i32 to index
    %c0_43 = arith.constant 0 : index
    %c0_44 = arith.constant 0 : index
    %37 = vector.load %arg4[%36, %c0_43, %c0_44] : memref<1x8x1xf32, #tpu.memory_space<vmem>>, vector<1x8x1xf32>
    %38 = vector.shape_cast %37 : vector<1x8x1xf32> to vector<8x1xf32>
    %39 = arith.truncf %32 : vector<8x32xf32> to vector<8x32xbf16>
    %cst = arith.constant dense<0.000000e+00> : vector<8x96xf32>
    %40 = tpu.matmul %39, %4, %cst {dimension_numbers = #tpu.dot_dimension_numbers<[1], [0], [0], [1], [0, 0, 1, 1], [], []>} : vector<8x32xbf16>, vector<32x96xbf16>, vector<8x96xf32> -> vector<8x96xf32>
    %41 = vector.broadcast %6 : vector<1x96xf32> to vector<8x96xf32>
    %42 = arith.addf %40, %41 : vector<8x96xf32>
    %43 = vector.extract_strided_slice %42 {offsets = [0, 0], sizes = [8, 16], strides = [1, 1]} : vector<8x96xf32> to vector<8x16xf32>
    %44 = arith.truncf %43 : vector<8x16xf32> to vector<8x16xbf16>
    %45 = vector.extract_strided_slice %42 {offsets = [0, 32], sizes = [8, 16], strides = [1, 1]} : vector<8x96xf32> to vector<8x16xf32>
    %46 = arith.truncf %45 : vector<8x16xf32> to vector<8x16xbf16>
    %47 = vector.extract_strided_slice %42 {offsets = [0, 64], sizes = [8, 16], strides = [1, 1]} : vector<8x96xf32> to vector<8x16xf32>
    %48 = arith.truncf %47 : vector<8x16xf32> to vector<8x16xbf16>
    %cst_45 = arith.constant dense<0.000000e+00> : vector<8x8xf32>
    %49 = tpu.matmul %44, %46, %cst_45 {dimension_numbers = #tpu.dot_dimension_numbers<[1], [1], [0], [0], [0, 0, 1, 0], [], []>} : vector<8x16xbf16>, vector<8x16xbf16>, vector<8x8xf32> -> vector<8x8xf32>
    %50 = vector.broadcast %35 : vector<1x8xf32> to vector<8x8xf32>
    %51 = arith.addf %49, %50 : vector<8x8xf32>
    %cst_46 = arith.constant dense<0xFF800000> : vector<8xf32>
    %52 = vector.multi_reduction <maximumf>, %51, %cst_46 [1] : vector<8x8xf32> to vector<8xf32>
    %53 = vector.shape_cast %52 : vector<8xf32> to vector<8x1xf32>
    %54 = vector.broadcast %53 : vector<8x1xf32> to vector<8x8xf32>
    %55 = arith.subf %51, %54 : vector<8x8xf32>
    %56 = math.exp %55 : vector<8x8xf32>
    %cst_47 = arith.constant dense<0.000000e+00> : vector<8xf32>
    %57 = vector.multi_reduction <add>, %56, %cst_47 [1] : vector<8x8xf32> to vector<8xf32>
    %58 = vector.shape_cast %57 : vector<8xf32> to vector<8x1xf32>
    %59 = tpu.reciprocal %58 {approx = true} : vector<8x1xf32> -> vector<8x1xf32>
    %60 = vector.broadcast %59 : vector<8x1xf32> to vector<8x8xf32>
    %61 = arith.mulf %56, %60 : vector<8x8xf32>
    %62 = arith.truncf %61 : vector<8x8xf32> to vector<8x8xbf16>
    %cst_48 = arith.constant dense<0.000000e+00> : vector<8x16xf32>
    %63 = tpu.matmul %62, %48, %cst_48 {dimension_numbers = #tpu.dot_dimension_numbers<[1], [0], [0], [1], [0, 0, 1, 1], [], []>} : vector<8x8xbf16>, vector<8x16xbf16>, vector<8x16xf32> -> vector<8x16xf32>
    %64 = arith.truncf %63 : vector<8x16xf32> to vector<8x16xbf16>
    %65 = vector.extract_strided_slice %8 {offsets = [0, 0, 0], sizes = [1, 16, 32], strides = [1, 1, 1]} : vector<2x16x32xbf16> to vector<1x16x32xbf16>
    %66 = vector.shape_cast %65 : vector<1x16x32xbf16> to vector<16x32xbf16>
    %cst_49 = arith.constant dense<0.000000e+00> : vector<8x32xf32>
    %67 = tpu.matmul %64, %66, %cst_49 {dimension_numbers = #tpu.dot_dimension_numbers<[1], [0], [0], [1], [0, 0, 1, 1], [], []>} : vector<8x16xbf16>, vector<16x32xbf16>, vector<8x32xf32> -> vector<8x32xf32>
    %68 = vector.extract_strided_slice %42 {offsets = [0, 16], sizes = [8, 16], strides = [1, 1]} : vector<8x96xf32> to vector<8x16xf32>
    %69 = arith.truncf %68 : vector<8x16xf32> to vector<8x16xbf16>
    %70 = vector.extract_strided_slice %42 {offsets = [0, 48], sizes = [8, 16], strides = [1, 1]} : vector<8x96xf32> to vector<8x16xf32>
    %71 = arith.truncf %70 : vector<8x16xf32> to vector<8x16xbf16>
    %72 = vector.extract_strided_slice %42 {offsets = [0, 80], sizes = [8, 16], strides = [1, 1]} : vector<8x96xf32> to vector<8x16xf32>
    %73 = arith.truncf %72 : vector<8x16xf32> to vector<8x16xbf16>
    %cst_50 = arith.constant dense<0.000000e+00> : vector<8x8xf32>
    %74 = tpu.matmul %69, %71, %cst_50 {dimension_numbers = #tpu.dot_dimension_numbers<[1], [1], [0], [0], [0, 0, 1, 0], [], []>} : vector<8x16xbf16>, vector<8x16xbf16>, vector<8x8xf32> -> vector<8x8xf32>
    %75 = vector.broadcast %35 : vector<1x8xf32> to vector<8x8xf32>
    %76 = arith.addf %74, %75 : vector<8x8xf32>
    %cst_51 = arith.constant dense<0xFF800000> : vector<8xf32>
    %77 = vector.multi_reduction <maximumf>, %76, %cst_51 [1] : vector<8x8xf32> to vector<8xf32>
    %78 = vector.shape_cast %77 : vector<8xf32> to vector<8x1xf32>
    %79 = vector.broadcast %78 : vector<8x1xf32> to vector<8x8xf32>
    %80 = arith.subf %76, %79 : vector<8x8xf32>
    %81 = math.exp %80 : vector<8x8xf32>
    %cst_52 = arith.constant dense<0.000000e+00> : vector<8xf32>
    %82 = vector.multi_reduction <add>, %81, %cst_52 [1] : vector<8x8xf32> to vector<8xf32>
    %83 = vector.shape_cast %82 : vector<8xf32> to vector<8x1xf32>
    %84 = tpu.reciprocal %83 {approx = true} : vector<8x1xf32> -> vector<8x1xf32>
    %85 = vector.broadcast %84 : vector<8x1xf32> to vector<8x8xf32>
    %86 = arith.mulf %81, %85 : vector<8x8xf32>
    %87 = arith.truncf %86 : vector<8x8xf32> to vector<8x8xbf16>
    %cst_53 = arith.constant dense<0.000000e+00> : vector<8x16xf32>
    %88 = tpu.matmul %87, %73, %cst_53 {dimension_numbers = #tpu.dot_dimension_numbers<[1], [0], [0], [1], [0, 0, 1, 1], [], []>} : vector<8x8xbf16>, vector<8x16xbf16>, vector<8x16xf32> -> vector<8x16xf32>
    %89 = arith.truncf %88 : vector<8x16xf32> to vector<8x16xbf16>
    %90 = vector.extract_strided_slice %8 {offsets = [1, 0, 0], sizes = [1, 16, 32], strides = [1, 1, 1]} : vector<2x16x32xbf16> to vector<1x16x32xbf16>
    %91 = vector.shape_cast %90 : vector<1x16x32xbf16> to vector<16x32xbf16>
    %cst_54 = arith.constant dense<0.000000e+00> : vector<8x32xf32>
    %92 = tpu.matmul %89, %91, %cst_54 {dimension_numbers = #tpu.dot_dimension_numbers<[1], [0], [0], [1], [0, 0, 1, 1], [], []>} : vector<8x16xbf16>, vector<16x32xbf16>, vector<8x32xf32> -> vector<8x32xf32>
    %93 = arith.addf %67, %92 : vector<8x32xf32>
    %94 = vector.broadcast %10 : vector<1x32xf32> to vector<8x32xf32>
    %95 = arith.addf %93, %94 : vector<8x32xf32>
    %96 = arith.addf %95, %32 : vector<8x32xf32>
    %cst_55 = arith.constant dense<0.000000e+00> : vector<8xf32>
    %97 = vector.multi_reduction <add>, %96, %cst_55 [1] : vector<8x32xf32> to vector<8xf32>
    %98 = vector.shape_cast %97 : vector<8xf32> to vector<8x1xf32>
    %cst_56 = arith.constant 3.200000e+01 : f32
    %99 = vector.broadcast %cst_56 : f32 to vector<8x1xf32>
    %100 = arith.divf %98, %99 : vector<8x1xf32>
    %101 = vector.broadcast %100 : vector<8x1xf32> to vector<8x32xf32>
    %102 = arith.subf %96, %101 : vector<8x32xf32>
    %103 = arith.mulf %102, %102 : vector<8x32xf32>
    %cst_57 = arith.constant dense<0.000000e+00> : vector<8xf32>
    %104 = vector.multi_reduction <add>, %103, %cst_57 [1] : vector<8x32xf32> to vector<8xf32>
    %105 = vector.shape_cast %104 : vector<8xf32> to vector<8x1xf32>
    %cst_58 = arith.constant 3.200000e+01 : f32
    %106 = vector.broadcast %cst_58 : f32 to vector<8x1xf32>
    %107 = arith.divf %105, %106 : vector<8x1xf32>
    %108 = vector.broadcast %100 : vector<8x1xf32> to vector<8x32xf32>
    %109 = arith.subf %96, %108 : vector<8x32xf32>
    %cst_59 = arith.constant 9.99999974E-6 : f32
    %110 = vector.broadcast %cst_59 : f32 to vector<8x1xf32>
    %111 = arith.addf %107, %110 : vector<8x1xf32>
    %112 = math.rsqrt %111 : vector<8x1xf32>
    %113 = vector.broadcast %112 : vector<8x1xf32> to vector<8x32xf32>
    %114 = arith.mulf %109, %113 : vector<8x32xf32>
    %115 = vector.broadcast %12 : vector<1x32xf32> to vector<8x32xf32>
    %116 = arith.mulf %114, %115 : vector<8x32xf32>
    %117 = vector.broadcast %14 : vector<1x32xf32> to vector<8x32xf32>
    %118 = arith.addf %116, %117 : vector<8x32xf32>
    %119 = vector.broadcast %38 : vector<8x1xf32> to vector<8x32xf32>
    %120 = arith.mulf %118, %119 : vector<8x32xf32>
    %c4_i32 = arith.constant 4 : i32
    %121 = tpu.dynamic_rotate %120 by %c4_i32 dim 0 : vector<8x32xf32>, i32 -> vector<8x32xf32>
    %c4_i32_60 = arith.constant 4 : i32
    %122 = vector.broadcast %c4_i32_60 : i32 to vector<8x1xi32>
    %123 = arith.cmpi sge, %27, %122 : vector<8x1xi32>
    %cst_61 = arith.constant 0.000000e+00 : f32
    %124 = vector.shape_cast %123 : vector<8x1xi1> to vector<8x1xi1>
    %125 = vector.broadcast %124 : vector<8x1xi1> to vector<8x32xi1>
    %126 = vector.broadcast %cst_61 : f32 to vector<8x32xf32>
    %127 = arith.select %125, %121, %126 : vector<8x32xi1>, vector<8x32xf32>
    %128 = arith.truncf %127 : vector<8x32xf32> to vector<8x32xbf16>
    %c3_i32 = arith.constant 3 : i32
    %129 = tpu.dynamic_rotate %120 by %c3_i32 dim 0 : vector<8x32xf32>, i32 -> vector<8x32xf32>
    %c3_i32_62 = arith.constant 3 : i32
    %130 = vector.broadcast %c3_i32_62 : i32 to vector<8x1xi32>
    %131 = arith.cmpi sge, %27, %130 : vector<8x1xi32>
    %cst_63 = arith.constant 0.000000e+00 : f32
    %132 = vector.shape_cast %131 : vector<8x1xi1> to vector<8x1xi1>
    %133 = vector.broadcast %132 : vector<8x1xi1> to vector<8x32xi1>
    %134 = vector.broadcast %cst_63 : f32 to vector<8x32xf32>
    %135 = arith.select %133, %129, %134 : vector<8x32xi1>, vector<8x32xf32>
    %136 = arith.truncf %135 : vector<8x32xf32> to vector<8x32xbf16>
    %c2_i32 = arith.constant 2 : i32
    %137 = tpu.dynamic_rotate %120 by %c2_i32 dim 0 : vector<8x32xf32>, i32 -> vector<8x32xf32>
    %c2_i32_64 = arith.constant 2 : i32
    %138 = vector.broadcast %c2_i32_64 : i32 to vector<8x1xi32>
    %139 = arith.cmpi sge, %27, %138 : vector<8x1xi32>
    %cst_65 = arith.constant 0.000000e+00 : f32
    %140 = vector.shape_cast %139 : vector<8x1xi1> to vector<8x1xi1>
    %141 = vector.broadcast %140 : vector<8x1xi1> to vector<8x32xi1>
    %142 = vector.broadcast %cst_65 : f32 to vector<8x32xf32>
    %143 = arith.select %141, %137, %142 : vector<8x32xi1>, vector<8x32xf32>
    %144 = arith.truncf %143 : vector<8x32xf32> to vector<8x32xbf16>
    %c1_i32_66 = arith.constant 1 : i32
    %145 = tpu.dynamic_rotate %120 by %c1_i32_66 dim 0 : vector<8x32xf32>, i32 -> vector<8x32xf32>
    %c1_i32_67 = arith.constant 1 : i32
    %146 = vector.broadcast %c1_i32_67 : i32 to vector<8x1xi32>
    %147 = arith.cmpi sge, %27, %146 : vector<8x1xi32>
    %cst_68 = arith.constant 0.000000e+00 : f32
    %148 = vector.shape_cast %147 : vector<8x1xi1> to vector<8x1xi1>
    %149 = vector.broadcast %148 : vector<8x1xi1> to vector<8x32xi1>
    %150 = vector.broadcast %cst_68 : f32 to vector<8x32xf32>
    %151 = arith.select %149, %145, %150 : vector<8x32xi1>, vector<8x32xf32>
    %152 = arith.truncf %151 : vector<8x32xf32> to vector<8x32xbf16>
    %153 = arith.truncf %120 : vector<8x32xf32> to vector<8x32xbf16>
    %c7_i32 = arith.constant 7 : i32
    %154 = tpu.dynamic_rotate %120 by %c7_i32 dim 0 : vector<8x32xf32>, i32 -> vector<8x32xf32>
    %c7_i32_69 = arith.constant 7 : i32
    %155 = vector.broadcast %c7_i32_69 : i32 to vector<8x1xi32>
    %156 = arith.cmpi slt, %27, %155 : vector<8x1xi32>
    %cst_70 = arith.constant 0.000000e+00 : f32
    %157 = vector.shape_cast %156 : vector<8x1xi1> to vector<8x1xi1>
    %158 = vector.broadcast %157 : vector<8x1xi1> to vector<8x32xi1>
    %159 = vector.broadcast %cst_70 : f32 to vector<8x32xf32>
    %160 = arith.select %158, %154, %159 : vector<8x32xi1>, vector<8x32xf32>
    %161 = arith.truncf %160 : vector<8x32xf32> to vector<8x32xbf16>
    %c6_i32 = arith.constant 6 : i32
    %162 = tpu.dynamic_rotate %120 by %c6_i32 dim 0 : vector<8x32xf32>, i32 -> vector<8x32xf32>
    %c6_i32_71 = arith.constant 6 : i32
    %163 = vector.broadcast %c6_i32_71 : i32 to vector<8x1xi32>
    %164 = arith.cmpi slt, %27, %163 : vector<8x1xi32>
    %cst_72 = arith.constant 0.000000e+00 : f32
    %165 = vector.shape_cast %164 : vector<8x1xi1> to vector<8x1xi1>
    %166 = vector.broadcast %165 : vector<8x1xi1> to vector<8x32xi1>
    %167 = vector.broadcast %cst_72 : f32 to vector<8x32xf32>
    %168 = arith.select %166, %162, %167 : vector<8x32xi1>, vector<8x32xf32>
    %169 = arith.truncf %168 : vector<8x32xf32> to vector<8x32xbf16>
    %c5_i32 = arith.constant 5 : i32
    %170 = tpu.dynamic_rotate %120 by %c5_i32 dim 0 : vector<8x32xf32>, i32 -> vector<8x32xf32>
    %c5_i32_73 = arith.constant 5 : i32
    %171 = vector.broadcast %c5_i32_73 : i32 to vector<8x1xi32>
    %172 = arith.cmpi slt, %27, %171 : vector<8x1xi32>
    %cst_74 = arith.constant 0.000000e+00 : f32
    %173 = vector.shape_cast %172 : vector<8x1xi1> to vector<8x1xi1>
    %174 = vector.broadcast %173 : vector<8x1xi1> to vector<8x32xi1>
    %175 = vector.broadcast %cst_74 : f32 to vector<8x32xf32>
    %176 = arith.select %174, %170, %175 : vector<8x32xi1>, vector<8x32xf32>
    %177 = arith.truncf %176 : vector<8x32xf32> to vector<8x32xbf16>
    %c4_i32_75 = arith.constant 4 : i32
    %178 = tpu.dynamic_rotate %120 by %c4_i32_75 dim 0 : vector<8x32xf32>, i32 -> vector<8x32xf32>
    %c4_i32_76 = arith.constant 4 : i32
    %179 = vector.broadcast %c4_i32_76 : i32 to vector<8x1xi32>
    %180 = arith.cmpi slt, %27, %179 : vector<8x1xi32>
    %cst_77 = arith.constant 0.000000e+00 : f32
    %181 = vector.shape_cast %180 : vector<8x1xi1> to vector<8x1xi1>
    %182 = vector.broadcast %181 : vector<8x1xi1> to vector<8x32xi1>
    %183 = vector.broadcast %cst_77 : f32 to vector<8x32xf32>
    %184 = arith.select %182, %178, %183 : vector<8x32xi1>, vector<8x32xf32>
    %185 = arith.truncf %184 : vector<8x32xf32> to vector<8x32xbf16>
    %186 = tpu.concatenate %128, %136, %144, %152, %153, %161, %169, %177, %185 in 1 : vector<8x32xbf16>, vector<8x32xbf16>, vector<8x32xbf16>, vector<8x32xbf16>, vector<8x32xbf16>, vector<8x32xbf16>, vector<8x32xbf16>, vector<8x32xbf16>, vector<8x32xbf16> -> vector<8x288xbf16>
    %cst_78 = arith.constant dense<0.000000e+00> : vector<8x64xf32>
    %187 = tpu.matmul %186, %16, %cst_78 {dimension_numbers = #tpu.dot_dimension_numbers<[1], [0], [0], [1], [0, 0, 1, 1], [], []>} : vector<8x288xbf16>, vector<288x64xbf16>, vector<8x64xf32> -> vector<8x64xf32>
    %188 = vector.broadcast %18 : vector<1x64xf32> to vector<8x64xf32>
    %189 = arith.addf %187, %188 : vector<8x64xf32>
    %cst_79 = arith.constant 0.000000e+00 : f32
    %190 = vector.broadcast %cst_79 : f32 to vector<8x64xf32>
    %191 = arith.maximumf %189, %190 : vector<8x64xf32>
    %192 = arith.truncf %191 : vector<8x64xf32> to vector<8x64xbf16>
    %cst_80 = arith.constant dense<0.000000e+00> : vector<8x32xf32>
    %193 = tpu.matmul %192, %20, %cst_80 {dimension_numbers = #tpu.dot_dimension_numbers<[1], [0], [0], [1], [0, 0, 1, 1], [], []>} : vector<8x64xbf16>, vector<64x32xbf16>, vector<8x32xf32> -> vector<8x32xf32>
    %194 = vector.broadcast %22 : vector<1x32xf32> to vector<8x32xf32>
    %195 = arith.addf %193, %194 : vector<8x32xf32>
    %196 = arith.addf %195, %120 : vector<8x32xf32>
    %cst_81 = arith.constant dense<0.000000e+00> : vector<8xf32>
    %197 = vector.multi_reduction <add>, %196, %cst_81 [1] : vector<8x32xf32> to vector<8xf32>
    %198 = vector.shape_cast %197 : vector<8xf32> to vector<8x1xf32>
    %cst_82 = arith.constant 3.200000e+01 : f32
    %199 = vector.broadcast %cst_82 : f32 to vector<8x1xf32>
    %200 = arith.divf %198, %199 : vector<8x1xf32>
    %201 = vector.broadcast %200 : vector<8x1xf32> to vector<8x32xf32>
    %202 = arith.subf %196, %201 : vector<8x32xf32>
    %203 = arith.mulf %202, %202 : vector<8x32xf32>
    %cst_83 = arith.constant dense<0.000000e+00> : vector<8xf32>
    %204 = vector.multi_reduction <add>, %203, %cst_83 [1] : vector<8x32xf32> to vector<8xf32>
    %205 = vector.shape_cast %204 : vector<8xf32> to vector<8x1xf32>
    %cst_84 = arith.constant 3.200000e+01 : f32
    %206 = vector.broadcast %cst_84 : f32 to vector<8x1xf32>
    %207 = arith.divf %205, %206 : vector<8x1xf32>
    %208 = vector.broadcast %200 : vector<8x1xf32> to vector<8x32xf32>
    %209 = arith.subf %196, %208 : vector<8x32xf32>
    %cst_85 = arith.constant 9.99999974E-6 : f32
    %210 = vector.broadcast %cst_85 : f32 to vector<8x1xf32>
    %211 = arith.addf %207, %210 : vector<8x1xf32>
    %212 = math.rsqrt %211 : vector<8x1xf32>
    %213 = vector.broadcast %212 : vector<8x1xf32> to vector<8x32xf32>
    %214 = arith.mulf %209, %213 : vector<8x32xf32>
    %215 = vector.broadcast %24 : vector<1x32xf32> to vector<8x32xf32>
    %216 = arith.mulf %214, %215 : vector<8x32xf32>
    %217 = vector.broadcast %26 : vector<1x32xf32> to vector<8x32xf32>
    %218 = arith.addf %216, %217 : vector<8x32xf32>
    %219 = vector.broadcast %38 : vector<8x1xf32> to vector<8x32xf32>
    %220 = arith.mulf %218, %219 : vector<8x32xf32>
    %221 = arith.index_cast %29 : i32 to index
    %c0_86 = arith.constant 0 : index
    %c0_87 = arith.constant 0 : index
    %222 = vector.load %arg17[%221, %c0_86, %c0_87] : memref<1x8x32xf32, #tpu.memory_space<vmem>>, vector<1x8x32xf32>
    %223 = vector.shape_cast %222 : vector<1x8x32xf32> to vector<8x32xf32>
    %224 = vector.shape_cast %220 : vector<8x32xf32> to vector<1x8x32xf32>
    tpu.vector_store %arg17[%221, %c0_86, %c0_87], %224 {strides = array<i32>} : memref<1x8x32xf32, #tpu.memory_space<vmem>>, vector<1x8x32xf32>,
    %c1_i32_88 = arith.constant 1 : i32
    return
  }
  func.func @transform_0(%arg0: i32, %arg1: i32) -> (i32, i32, i32) {
    %c0_i32 = arith.constant 0 : i32
    %c0_i32_0 = arith.constant 0 : i32
    %c0_i32_1 = arith.constant 0 : i32
    return %arg0, %c0_i32, %c0_i32_0 : i32, i32, i32
  }
  func.func @transform_1(%arg0: i32, %arg1: i32) -> (i32, i32, i32) {
    %c0_i32 = arith.constant 0 : i32
    %c0_i32_0 = arith.constant 0 : i32
    %c0_i32_1 = arith.constant 0 : i32
    return %arg0, %c0_i32, %c0_i32_0 : i32, i32, i32
  }
  func.func @transform_2(%arg0: i32, %arg1: i32) -> (i32, i32, i32) {
    %c0_i32 = arith.constant 0 : i32
    %c0_i32_0 = arith.constant 0 : i32
    %c0_i32_1 = arith.constant 0 : i32
    return %arg0, %c0_i32, %c0_i32_0 : i32, i32, i32
  }
  func.func @transform_3(%arg0: i32, %arg1: i32) -> (i32, i32, i32) {
    %c0_i32 = arith.constant 0 : i32
    %c0_i32_0 = arith.constant 0 : i32
    %c0_i32_1 = arith.constant 0 : i32
    return %arg1, %c0_i32, %c0_i32_0 : i32, i32, i32
  }
  func.func @transform_4(%arg0: i32, %arg1: i32) -> (i32, i32, i32) {
    %c0_i32 = arith.constant 0 : i32
    %c0_i32_0 = arith.constant 0 : i32
    %c0_i32_1 = arith.constant 0 : i32
    return %arg1, %c0_i32, %c0_i32_0 : i32, i32, i32
  }
  func.func @transform_5(%arg0: i32, %arg1: i32) -> (i32, i32, i32, i32) {
    %c0_i32 = arith.constant 0 : i32
    %c0_i32_0 = arith.constant 0 : i32
    %c0_i32_1 = arith.constant 0 : i32
    %c0_i32_2 = arith.constant 0 : i32
    return %arg1, %c0_i32, %c0_i32_0, %c0_i32_1 : i32, i32, i32, i32
  }
  func.func @transform_6(%arg0: i32, %arg1: i32) -> (i32, i32, i32) {
    %c0_i32 = arith.constant 0 : i32
    %c0_i32_0 = arith.constant 0 : i32
    %c0_i32_1 = arith.constant 0 : i32
    return %arg1, %c0_i32, %c0_i32_0 : i32, i32, i32
  }
  func.func @transform_7(%arg0: i32, %arg1: i32) -> (i32, i32, i32) {
    %c0_i32 = arith.constant 0 : i32
    %c0_i32_0 = arith.constant 0 : i32
    %c0_i32_1 = arith.constant 0 : i32
    return %arg1, %c0_i32, %c0_i32_0 : i32, i32, i32
  }
  func.func @transform_8(%arg0: i32, %arg1: i32) -> (i32, i32, i32) {
    %c0_i32 = arith.constant 0 : i32
    %c0_i32_0 = arith.constant 0 : i32
    %c0_i32_1 = arith.constant 0 : i32
    return %arg1, %c0_i32, %c0_i32_0 : i32, i32, i32
  }
  func.func @transform_9(%arg0: i32, %arg1: i32) -> (i32, i32, i32) {
    %c0_i32 = arith.constant 0 : i32
    %c0_i32_0 = arith.constant 0 : i32
    %c0_i32_1 = arith.constant 0 : i32
    return %arg1, %c0_i32, %c0_i32_0 : i32, i32, i32
  }
  func.func @transform_10(%arg0: i32, %arg1: i32) -> (i32, i32, i32) {
    %c0_i32 = arith.constant 0 : i32
    %c0_i32_0 = arith.constant 0 : i32
    %c0_i32_1 = arith.constant 0 : i32
    return %arg1, %c0_i32, %c0_i32_0 : i32, i32, i32
  }
  func.func @transform_11(%arg0: i32, %arg1: i32) -> (i32, i32, i32) {
    %c0_i32 = arith.constant 0 : i32
    %c0_i32_0 = arith.constant 0 : i32
    %c0_i32_1 = arith.constant 0 : i32
    return %arg1, %c0_i32, %c0_i32_0 : i32, i32, i32
  }
  func.func @transform_12(%arg0: i32, %arg1: i32) -> (i32, i32, i32) {
    %c0_i32 = arith.constant 0 : i32
    %c0_i32_0 = arith.constant 0 : i32
    %c0_i32_1 = arith.constant 0 : i32
    return %arg1, %c0_i32, %c0_i32_0 : i32, i32, i32
  }
  func.func @transform_13(%arg0: i32, %arg1: i32) -> (i32, i32, i32) {
    %c0_i32 = arith.constant 0 : i32
    %c0_i32_0 = arith.constant 0 : i32
    %c0_i32_1 = arith.constant 0 : i32
    return %arg1, %c0_i32, %c0_i32_0 : i32, i32, i32
  }
  func.func @transform_14(%arg0: i32, %arg1: i32) -> (i32, i32, i32) {
    %c0_i32 = arith.constant 0 : i32
    %c0_i32_0 = arith.constant 0 : i32
    %c0_i32_1 = arith.constant 0 : i32
    return %arg1, %c0_i32, %c0_i32_0 : i32, i32, i32
  }
  func.func @transform_15(%arg0: i32, %arg1: i32) -> (i32, i32, i32) {
    %c0_i32 = arith.constant 0 : i32
    %c0_i32_0 = arith.constant 0 : i32
    %c0_i32_1 = arith.constant 0 : i32
    return %arg0, %c0_i32, %c0_i32_0 : i32, i32, i32
  }
}

</mosaic_0001>

<llo_original>
// kernel: tpu_custom_call.1
$region0: #{tpu_custom_call.1}
  #allocation0 [shape = 'u32[]', space=smem, size = 0x4, offset = 0x4, fixed_abs, tag = 'smem constant byte address 0x4 - core index']
  #allocation1 [shape = 'u32[144,128]{1,0:T(1,128)}', space=vmem, size = 0x12000, scoped, tag = 'internal scratch']
  %s0 = inlined_call_operand.vmem [shape: f32[2,8,32], index: 0, kind: input, shape index: {}]
  %s1 = inlined_call_operand.vmem [shape: f32[2,1,8], index: 1, kind: input, shape index: {}]
  %s2 = inlined_call_operand.vmem [shape: f32[2,8,1], index: 2, kind: input, shape index: {}]
  %s3 = inlined_call_operand.vmem [shape: bf16[2,32,96], index: 3, kind: input, shape index: {}]
  %s4 = inlined_call_operand.vmem [shape: f32[2,1,96], index: 4, kind: input, shape index: {}]
  %s5 = inlined_call_operand.vmem [shape: bf16[2,2,16,32], index: 5, kind: input, shape index: {}]
  %s6 = inlined_call_operand.vmem [shape: f32[2,1,32], index: 6, kind: input, shape index: {}]
  %s7 = inlined_call_operand.vmem [shape: f32[2,1,32], index: 7, kind: input, shape index: {}]
  %s8 = inlined_call_operand.vmem [shape: f32[2,1,32], index: 8, kind: input, shape index: {}]
  %s9 = inlined_call_operand.vmem [shape: bf16[2,288,64], index: 9, kind: input, shape index: {}]
  %s10 = inlined_call_operand.vmem [shape: f32[2,1,64], index: 10, kind: input, shape index: {}]
  %s11 = inlined_call_operand.vmem [shape: bf16[2,64,32], index: 11, kind: input, shape index: {}]
  %s12 = inlined_call_operand.vmem [shape: f32[2,1,32], index: 12, kind: input, shape index: {}]
  %s13 = inlined_call_operand.vmem [shape: f32[2,1,32], index: 13, kind: input, shape index: {}]
  %s14 = inlined_call_operand.vmem [shape: f32[2,1,32], index: 14, kind: input, shape index: {}]
  %s15 = inlined_call_operand.hbm [shape: f32[2,8,32], index: 15, kind: output, shape index: {}]
  %s16 = sld [smem:[#allocation0]]
  $region97: #{tpu_custom_call.1} parent=0
    _
  %s18 = ssub.s32 1, %s16
  %s19 = scalar_select 0, %s18, %s16
  $region1: #{tpu_custom_call.1} parent=0
    #allocation2 [shape = 'u8[8192]{0}', space=vmem, size = 0x2000, scoped, tag = 'output window, operand 0']
    #allocation3 [shape = 's32[2]{0}', space=sflag, size = 0x8, scoped, tag = 'scoped memory for tpu_custom_call.1']
    %20 = vsyncpa [#allocation3], 0
    %s21 = scalar_lea.sflag [#allocation3], 1
    %22 = vsyncpa %s21, 0
    loop: start=0, step=1, limit=6
    $region2: #{tpu_custom_call.1} parent=1 // loop_pre_header
      _
    $region3: #{tpu_custom_call.1} parent=1 // loop_header
      %s24 = sphi 0, %s28
      %p25 = scmp.ge.s32.totalorder %s24, 6
      %s31 = sphi 0, %s43
      %s32 = sphi 0, %s39
      %s33 = sphi 0, %s31
      %s34 = sphi 0, %s32
      %s35 = sphi 0, %s33
      %s36 = sphi 0, %s34
      %s46 = sphi 0, %s48
      %s49 = sphi 0, %s46
      %s50 = sphi 0, %s49
      %s66 = sphi 0, %s50
      %s72 = sphi 0, %s74
      %s75 = sphi 0, %s72
      %s76 = sphi 0, %s75
      %s92 = sphi 0, %s76
      %s98 = sphi 0, %s100
      %s101 = sphi 0, %s98
      %s102 = sphi 0, %s101
      %s118 = sphi 0, %s102
      %s124 = sphi 0, %s126
      %s127 = sphi 0, %s124
      %s128 = sphi 0, %s127
      %s144 = sphi 0, %s128
      %s150 = sphi 0, %s152
      %s153 = sphi 0, %s150
      %s154 = sphi 0, %s153
      %s170 = sphi 0, %s154
      %s176 = sphi 0, %s178
      %s179 = sphi 0, %s176
      %s180 = sphi 0, %s179
      %s196 = sphi 0, %s180
      %s202 = sphi 0, %s204
      %s205 = sphi 0, %s202
      %s206 = sphi 0, %s205
      %s222 = sphi 0, %s206
      %s228 = sphi 0, %s230
      %s231 = sphi 0, %s228
      %s232 = sphi 0, %s231
      %s248 = sphi 0, %s232
      %s254 = sphi 0, %s256
      %s257 = sphi 0, %s254
      %s258 = sphi 0, %s257
      %s274 = sphi 0, %s258
      %s280 = sphi 0, %s282
      %s283 = sphi 0, %s280
      %s284 = sphi 0, %s283
      %s300 = sphi 0, %s284
      %s306 = sphi 0, %s308
      %s309 = sphi 0, %s306
      %s310 = sphi 0, %s309
      %s326 = sphi 0, %s310
      %s332 = sphi 0, %s334
      %s335 = sphi 0, %s332
      %s336 = sphi 0, %s335
      %s352 = sphi 0, %s336
      %s358 = sphi 0, %s360
      %s361 = sphi 0, %s358
      %s362 = sphi 0, %s361
      %s378 = sphi 0, %s362
      %s384 = sphi 0, %s386
      %s387 = sphi 0, %s384
      %s388 = sphi 0, %s387
      %s404 = sphi 0, %s388
      %s410 = sphi 0, %s412
      %s413 = sphi 0, %s410
      %s414 = sphi 0, %s413
      %s430 = sphi 0, %s414
      %s436 = sphi 0, %s438
      %s439 = sphi 0, %s436
      %s440 = sphi 0, %s439
      %s456 = sphi 0, %s440
    $region4: #{tpu_custom_call.1} parent=1 // loop_header_branch
      %27 = sbr.rel (%p25) target = $region8
    $region5: #{tpu_custom_call.1} parent=1 // loop_body
      %s29 = ssub.s32 %s24, 1
      %s30 = ssub.s32 %s24, 2
      %s37 = sadd.s32 1, %s32
      %p38 = scmp.ge.s32.totalorder %s37, 2
      %s39 = scalar_select %p38, 0, %s37
      %s40 = sadd.s32 1, %s31
      %s41 = scalar_select %p38, %s40, %s31
      %p42 = scmp.ge.s32.totalorder %s41, 2
      %s43 = scalar_select %p42, 0, %s41
      %s44 = ssub.s32 %s31, %s43
      %p45 = scmp.eq.s32.totalorder %s44, 0
      %s47 = sadd.s32 %s46, 1
      %s48 = scalar_select %p45, %s46, %s47
      %p51 = pneg %p45
      %p52 = scmp.eq.s32.totalorder %s24, 3
      %p53 = por %p51, %p52
      %p54 = scmp.ne.s32.totalorder %s46, %s49
      %p55 = scmp.eq.s32.totalorder %s24, 0
      %p56 = por %p54, %p55
      %p57 = scmp.ne.s32.totalorder %s46, %s49
      %p58 = scmp.eq.s32.totalorder %s29, 3
      %p59 = por %p57, %p58
      %p60 = scmp.ne.s32.totalorder %s49, %s50
      %p61 = scmp.eq.s32.totalorder %s29, 0
      %p62 = por %p60, %p61
      %p63 = scmp.ne.s32.totalorder %s49, %s50
      %p64 = scmp.eq.s32.totalorder %s30, 3
      %p65 = por %p63, %p64
      %p67 = scmp.ne.s32.totalorder %s50, %s66
      %p68 = scmp.eq.s32.totalorder %s30, 0
      %p69 = por %p67, %p68
      %s70 = ssub.s32 %s31, %s43
      %p71 = scmp.eq.s32.totalorder %s70, 0
      %s73 = sadd.s32 %s72, 1
      %s74 = scalar_select %p71, %s72, %s73
      %p77 = pneg %p71
      %p78 = scmp.eq.s32.totalorder %s24, 3
      %p79 = por %p77, %p78
      %p80 = scmp.ne.s32.totalorder %s72, %s75
      %p81 = scmp.eq.s32.totalorder %s24, 0
      %p82 = por %p80, %p81
      %p83 = scmp.ne.s32.totalorder %s72, %s75
      %p84 = scmp.eq.s32.totalorder %s29, 3
      %p85 = por %p83, %p84
      %p86 = scmp.ne.s32.totalorder %s75, %s76
      %p87 = scmp.eq.s32.totalorder %s29, 0
      %p88 = por %p86, %p87
      %p89 = scmp.ne.s32.totalorder %s75, %s76
      %p90 = scmp.eq.s32.totalorder %s30, 3
      %p91 = por %p89, %p90
      %p93 = scmp.ne.s32.totalorder %s76, %s92
      %p94 = scmp.eq.s32.totalorder %s30, 0
      %p95 = por %p93, %p94
      %s96 = ssub.s32 %s31, %s43
      %p97 = scmp.eq.s32.totalorder %s96, 0
      %s99 = sadd.s32 %s98, 1
      %s100 = scalar_select %p97, %s98, %s99
      %p103 = pneg %p97
      %p104 = scmp.eq.s32.totalorder %s24, 3
      %p105 = por %p103, %p104
      %p106 = scmp.ne.s32.totalorder %s98, %s101
      %p107 = scmp.eq.s32.totalorder %s24, 0
      %p108 = por %p106, %p107
      %p109 = scmp.ne.s32.totalorder %s98, %s101
      %p110 = scmp.eq.s32.totalorder %s29, 3
      %p111 = por %p109, %p110
      %p112 = scmp.ne.s32.totalorder %s101, %s102
      %p113 = scmp.eq.s32.totalorder %s29, 0
      %p114 = por %p112, %p113
      %p115 = scmp.ne.s32.totalorder %s101, %s102
      %p116 = scmp.eq.s32.totalorder %s30, 3
      %p117 = por %p115, %p116
      %p119 = scmp.ne.s32.totalorder %s102, %s118
      %p120 = scmp.eq.s32.totalorder %s30, 0
      %p121 = por %p119, %p120
      %s122 = ssub.s32 %s32, %s39
      %p123 = scmp.eq.s32.totalorder %s122, 0
      %s125 = sadd.s32 %s124, 1
      %s126 = scalar_select %p123, %s124, %s125
      %p129 = pneg %p123
      %p130 = scmp.eq.s32.totalorder %s24, 3
      %p131 = por %p129, %p130
      %p132 = scmp.ne.s32.totalorder %s124, %s127
      %p133 = scmp.eq.s32.totalorder %s24, 0
      %p134 = por %p132, %p133
      %p135 = scmp.ne.s32.totalorder %s124, %s127
      %p136 = scmp.eq.s32.totalorder %s29, 3
      %p137 = por %p135, %p136
      %p138 = scmp.ne.s32.totalorder %s127, %s128
      %p139 = scmp.eq.s32.totalorder %s29, 0
      %p140 = por %p138, %p139
      %p141 = scmp.ne.s32.totalorder %s127, %s128
      %p142 = scmp.eq.s32.totalorder %s30, 3
      %p143 = por %p141, %p142
      %p145 = scmp.ne.s32.totalorder %s128, %s144
      %p146 = scmp.eq.s32.totalorder %s30, 0
      %p147 = por %p145, %p146
      %s148 = ssub.s32 %s32, %s39
      %p149 = scmp.eq.s32.totalorder %s148, 0
      %s151 = sadd.s32 %s150, 1
      %s152 = scalar_select %p149, %s150, %s151
      %p155 = pneg %p149
      %p156 = scmp.eq.s32.totalorder %s24, 3
      %p157 = por %p155, %p156
      %p158 = scmp.ne.s32.totalorder %s150, %s153
      %p159 = scmp.eq.s32.totalorder %s24, 0
      %p160 = por %p158, %p159
      %p161 = scmp.ne.s32.totalorder %s150, %s153
      %p162 = scmp.eq.s32.totalorder %s29, 3
      %p163 = por %p161, %p162
      %p164 = scmp.ne.s32.totalorder %s153, %s154
      %p165 = scmp.eq.s32.totalorder %s29, 0
      %p166 = por %p164, %p165
      %p167 = scmp.ne.s32.totalorder %s153, %s154
      %p168 = scmp.eq.s32.totalorder %s30, 3
      %p169 = por %p167, %p168
      %p171 = scmp.ne.s32.totalorder %s154, %s170
      %p172 = scmp.eq.s32.totalorder %s30, 0
      %p173 = por %p171, %p172
      %s174 = ssub.s32 %s32, %s39
      %p175 = scmp.eq.s32.totalorder %s174, 0
      %s177 = sadd.s32 %s176, 1
      %s178 = scalar_select %p175, %s176, %s177
      %p181 = pneg %p175
      %p182 = scmp.eq.s32.totalorder %s24, 3
      %p183 = por %p181, %p182
      %p184 = scmp.ne.s32.totalorder %s176, %s179
      %p185 = scmp.eq.s32.totalorder %s24, 0
      %p186 = por %p184, %p185
      %p187 = scmp.ne.s32.totalorder %s176, %s179
      %p188 = scmp.eq.s32.totalorder %s29, 3
      %p189 = por %p187, %p188
      %p190 = scmp.ne.s32.totalorder %s179, %s180
      %p191 = scmp.eq.s32.totalorder %s29, 0
      %p192 = por %p190, %p191
      %p193 = scmp.ne.s32.totalorder %s179, %s180
      %p194 = scmp.eq.s32.totalorder %s30, 3
      %p195 = por %p193, %p194
      %p197 = scmp.ne.s32.totalorder %s180, %s196
      %p198 = scmp.eq.s32.totalorder %s30, 0
      %p199 = por %p197, %p198
      %s200 = ssub.s32 %s32, %s39
      %p201 = scmp.eq.s32.totalorder %s200, 0
      %s203 = sadd.s32 %s202, 1
      %s204 = scalar_select %p201, %s202, %s203
      %p207 = pneg %p201
      %p208 = scmp.eq.s32.totalorder %s24, 3
      %p209 = por %p207, %p208
      %p210 = scmp.ne.s32.totalorder %s202, %s205
      %p211 = scmp.eq.s32.totalorder %s24, 0
      %p212 = por %p210, %p211
      %p213 = scmp.ne.s32.totalorder %s202, %s205
      %p214 = scmp.eq.s32.totalorder %s29, 3
      %p215 = por %p213, %p214
      %p216 = scmp.ne.s32.totalorder %s205, %s206
      %p217 = scmp.eq.s32.totalorder %s29, 0
      %p218 = por %p216, %p217
      %p219 = scmp.ne.s32.totalorder %s205, %s206
      %p220 = scmp.eq.s32.totalorder %s30, 3
      %p221 = por %p219, %p220
      %p223 = scmp.ne.s32.totalorder %s206, %s222
      %p224 = scmp.eq.s32.totalorder %s30, 0
      %p225 = por %p223, %p224
      %s226 = ssub.s32 %s32, %s39
      %p227 = scmp.eq.s32.totalorder %s226, 0
      %s229 = sadd.s32 %s228, 1
      %s230 = scalar_select %p227, %s228, %s229
      %p233 = pneg %p227
      %p234 = scmp.eq.s32.totalorder %s24, 3
      %p235 = por %p233, %p234
      %p236 = scmp.ne.s32.totalorder %s228, %s231
      %p237 = scmp.eq.s32.totalorder %s24, 0
      %p238 = por %p236, %p237
      %p239 = scmp.ne.s32.totalorder %s228, %s231
      %p240 = scmp.eq.s32.totalorder %s29, 3
      %p241 = por %p239, %p240
      %p242 = scmp.ne.s32.totalorder %s231, %s232
      %p243 = scmp.eq.s32.totalorder %s29, 0
      %p244 = por %p242, %p243
      %p245 = scmp.ne.s32.totalorder %s231, %s232
      %p246 = scmp.eq.s32.totalorder %s30, 3
      %p247 = por %p245, %p246
      %p249 = scmp.ne.s32.totalorder %s232, %s248
      %p250 = scmp.eq.s32.totalorder %s30, 0
      %p251 = por %p249, %p250
      %s252 = ssub.s32 %s32, %s39
      %p253 = scmp.eq.s32.totalorder %s252, 0
      %s255 = sadd.s32 %s254, 1
      %s256 = scalar_select %p253, %s254, %s255
      %p259 = pneg %p253
      %p260 = scmp.eq.s32.totalorder %s24, 3
      %p261 = por %p259, %p260
      %p262 = scmp.ne.s32.totalorder %s254, %s257
      %p263 = scmp.eq.s32.totalorder %s24, 0
      %p264 = por %p262, %p263
      %p265 = scmp.ne.s32.totalorder %s254, %s257
      %p266 = scmp.eq.s32.totalorder %s29, 3
      %p267 = por %p265, %p266
      %p268 = scmp.ne.s32.totalorder %s257, %s258
      %p269 = scmp.eq.s32.totalorder %s29, 0
      %p270 = por %p268, %p269
      %p271 = scmp.ne.s32.totalorder %s257, %s258
      %p272 = scmp.eq.s32.totalorder %s30, 3
      %p273 = por %p271, %p272
      %p275 = scmp.ne.s32.totalorder %s258, %s274
      %p276 = scmp.eq.s32.totalorder %s30, 0
      %p277 = por %p275, %p276
      %s278 = ssub.s32 %s32, %s39
      %p279 = scmp.eq.s32.totalorder %s278, 0
      %s281 = sadd.s32 %s280, 1
      %s282 = scalar_select %p279, %s280, %s281
      %p285 = pneg %p279
      %p286 = scmp.eq.s32.totalorder %s24, 3
      %p287 = por %p285, %p286
      %p288 = scmp.ne.s32.totalorder %s280, %s283
      %p289 = scmp.eq.s32.totalorder %s24, 0
      %p290 = por %p288, %p289
      %p291 = scmp.ne.s32.totalorder %s280, %s283
      %p292 = scmp.eq.s32.totalorder %s29, 3
      %p293 = por %p291, %p292
      %p294 = scmp.ne.s32.totalorder %s283, %s284
      %p295 = scmp.eq.s32.totalorder %s29, 0
      %p296 = por %p294, %p295
      %p297 = scmp.ne.s32.totalorder %s283, %s284
      %p298 = scmp.eq.s32.totalorder %s30, 3
      %p299 = por %p297, %p298
      %p301 = scmp.ne.s32.totalorder %s284, %s300
      %p302 = scmp.eq.s32.totalorder %s30, 0
      %p303 = por %p301, %p302
      %s304 = ssub.s32 %s32, %s39
      %p305 = scmp.eq.s32.totalorder %s304, 0
      %s307 = sadd.s32 %s306, 1
      %s308 = scalar_select %p305, %s306, %s307
      %p311 = pneg %p305
      %p312 = scmp.eq.s32.totalorder %s24, 3
      %p313 = por %p311, %p312
      %p314 = scmp.ne.s32.totalorder %s306, %s309
      %p315 = scmp.eq.s32.totalorder %s24, 0
      %p316 = por %p314, %p315
      %p317 = scmp.ne.s32.totalorder %s306, %s309
      %p318 = scmp.eq.s32.totalorder %s29, 3
      %p319 = por %p317, %p318
      %p320 = scmp.ne.s32.totalorder %s309, %s310
      %p321 = scmp.eq.s32.totalorder %s29, 0
      %p322 = por %p320, %p321
      %p323 = scmp.ne.s32.totalorder %s309, %s310
      %p324 = scmp.eq.s32.totalorder %s30, 3
      %p325 = por %p323, %p324
      %p327 = scmp.ne.s32.totalorder %s310, %s326
      %p328 = scmp.eq.s32.totalorder %s30, 0
      %p329 = por %p327, %p328
      %s330 = ssub.s32 %s32, %s39
      %p331 = scmp.eq.s32.totalorder %s330, 0
      %s333 = sadd.s32 %s332, 1
      %s334 = scalar_select %p331, %s332, %s333
      %p337 = pneg %p331
      %p338 = scmp.eq.s32.totalorder %s24, 3
      %p339 = por %p337, %p338
      %p340 = scmp.ne.s32.totalorder %s332, %s335
      %p341 = scmp.eq.s32.totalorder %s24, 0
      %p342 = por %p340, %p341
      %p343 = scmp.ne.s32.totalorder %s332, %s335
      %p344 = scmp.eq.s32.totalorder %s29, 3
      %p345 = por %p343, %p344
      %p346 = scmp.ne.s32.totalorder %s335, %s336
      %p347 = scmp.eq.s32.totalorder %s29, 0
      %p348 = por %p346, %p347
      %p349 = scmp.ne.s32.totalorder %s335, %s336
      %p350 = scmp.eq.s32.totalorder %s30, 3
      %p351 = por %p349, %p350
      %p353 = scmp.ne.s32.totalorder %s336, %s352
      %p354 = scmp.eq.s32.totalorder %s30, 0
      %p355 = por %p353, %p354
      %s356 = ssub.s32 %s32, %s39
      %p357 = scmp.eq.s32.totalorder %s356, 0
      %s359 = sadd.s32 %s358, 1
      %s360 = scalar_select %p357, %s358, %s359
      %p363 = pneg %p357
      %p364 = scmp.eq.s32.totalorder %s24, 3
      %p365 = por %p363, %p364
      %p366 = scmp.ne.s32.totalorder %s358, %s361
      %p367 = scmp.eq.s32.totalorder %s24, 0
      %p368 = por %p366, %p367
      %p369 = scmp.ne.s32.totalorder %s358, %s361
      %p370 = scmp.eq.s32.totalorder %s29, 3
      %p371 = por %p369, %p370
      %p372 = scmp.ne.s32.totalorder %s361, %s362
      %p373 = scmp.eq.s32.totalorder %s29, 0
      %p374 = por %p372, %p373
      %p375 = scmp.ne.s32.totalorder %s361, %s362
      %p376 = scmp.eq.s32.totalorder %s30, 3
      %p377 = por %p375, %p376
      %p379 = scmp.ne.s32.totalorder %s362, %s378
      %p380 = scmp.eq.s32.totalorder %s30, 0
      %p381 = por %p379, %p380
      %s382 = ssub.s32 %s32, %s39
      %p383 = scmp.eq.s32.totalorder %s382, 0
      %s385 = sadd.s32 %s384, 1
      %s386 = scalar_select %p383, %s384, %s385
      %p389 = pneg %p383
      %p390 = scmp.eq.s32.totalorder %s24, 3
      %p391 = por %p389, %p390
      %p392 = scmp.ne.s32.totalorder %s384, %s387
      %p393 = scmp.eq.s32.totalorder %s24, 0
      %p394 = por %p392, %p393
      %p395 = scmp.ne.s32.totalorder %s384, %s387
      %p396 = scmp.eq.s32.totalorder %s29, 3
      %p397 = por %p395, %p396
      %p398 = scmp.ne.s32.totalorder %s387, %s388
      %p399 = scmp.eq.s32.totalorder %s29, 0
      %p400 = por %p398, %p399
      %p401 = scmp.ne.s32.totalorder %s387, %s388
      %p402 = scmp.eq.s32.totalorder %s30, 3
      %p403 = por %p401, %p402
      %p405 = scmp.ne.s32.totalorder %s388, %s404
      %p406 = scmp.eq.s32.totalorder %s30, 0
      %p407 = por %p405, %p406
      %s408 = ssub.s32 %s32, %s39
      %p409 = scmp.eq.s32.totalorder %s408, 0
      %s411 = sadd.s32 %s410, 1
      %s412 = scalar_select %p409, %s410, %s411
      %p415 = pneg %p409
      %p416 = scmp.eq.s32.totalorder %s24, 3
      %p417 = por %p415, %p416
      %p418 = scmp.ne.s32.totalorder %s410, %s413
      %p419 = scmp.eq.s32.totalorder %s24, 0
      %p420 = por %p418, %p419
      %p421 = scmp.ne.s32.totalorder %s410, %s413
      %p422 = scmp.eq.s32.totalorder %s29, 3
      %p423 = por %p421, %p422
      %p424 = scmp.ne.s32.totalorder %s413, %s414
      %p425 = scmp.eq.s32.totalorder %s29, 0
      %p426 = por %p424, %p425
      %p427 = scmp.ne.s32.totalorder %s413, %s414
      %p428 = scmp.eq.s32.totalorder %s30, 3
      %p429 = por %p427, %p428
      %p431 = scmp.ne.s32.totalorder %s414, %s430
      %p432 = scmp.eq.s32.totalorder %s30, 0
      %p433 = por %p431, %p432
      %s434 = ssub.s32 %s31, %s43
      %p435 = scmp.eq.s32.totalorder %s434, 0
      %s437 = sadd.s32 %s436, 1
      %s438 = scalar_select %p435, %s436, %s437
      %p441 = pneg %p435
      %p442 = scmp.eq.s32.totalorder %s24, 3
      %p443 = por %p441, %p442
      %p444 = scmp.ne.s32.totalorder %s436, %s439
      %p445 = scmp.eq.s32.totalorder %s24, 0
      %p446 = por %p444, %p445
      %p447 = scmp.ne.s32.totalorder %s436, %s439
      %p448 = scmp.eq.s32.totalorder %s29, 3
      %p449 = por %p447, %p448
      %p450 = scmp.ne.s32.totalorder %s439, %s440
      %p451 = scmp.eq.s32.totalorder %s29, 0
      %p452 = por %p450, %p451
      %p453 = scmp.ne.s32.totalorder %s439, %s440
      %p454 = scmp.eq.s32.totalorder %s30, 3
      %p455 = por %p453, %p454
      %p457 = scmp.ne.s32.totalorder %s440, %s456
      %p458 = scmp.eq.s32.totalorder %s30, 0
      %p459 = por %p457, %p458
      %p460 = scmp.le.s32.totalorder 1, %s24
      %p461 = scmp.lt.s32.totalorder %s24, 5
      %p462 = pnand %p460, %p461
      %p463 = pneg %p462
      // Predicated region
      $region9: #{tpu_custom_call.1} parent=5 // pred_check
        _
      $region10: #{tpu_custom_call.1} parent=5 // pred_check_branch
        %465 = sbr.rel (%p462) target = $region12
      $region11: #{tpu_custom_call.1} parent=5 // pred_region
        %s466 = ssub.s32 %s24, 1
      $region12: #{tpu_custom_call.1} parent=5 // pred_fallthru
        _
      %p467 = scmp.lt.s32.totalorder %s24, 4
      // Predicated region
      $region13: #{tpu_custom_call.1} parent=5 // pred_check
        %p468 = pneg %p467
      $region14: #{tpu_custom_call.1} parent=5 // pred_check_branch
        %470 = sbr.rel (%p468) target = $region16
      $region15: #{tpu_custom_call.1} parent=5 // pred_region
        // Predicated region
        $region17: #{tpu_custom_call.1} parent=15 // pred_check
          %p471 = pneg %p56
        $region18: #{tpu_custom_call.1} parent=15 // pred_check_branch
          %473 = sbr.rel (%p471) target = $region20
        $region19: #{tpu_custom_call.1} parent=15 // pred_region
          %p474 = scmp.lt.s32.totalorder %s31, 1
          %s475 = scalar_select %p474, %s31, 1
          %s476 = smul.addr %s475, 8
          %s477 = scalar_lea.vmem %s0, %s476
        $region20: #{tpu_custom_call.1} parent=15 // pred_fallthru
          _
        // Predicated region
        $region21: #{tpu_custom_call.1} parent=15 // pred_check
          %p478 = pneg %p82
        $region22: #{tpu_custom_call.1} parent=15 // pred_check_branch
          %480 = sbr.rel (%p478) target = $region24
        $region23: #{tpu_custom_call.1} parent=15 // pred_region
          %p481 = scmp.lt.s32.totalorder %s31, 1
          %s482 = scalar_select %p481, %s31, 1
          %s483 = scalar_lea.vmem %s1, %s482
        $region24: #{tpu_custom_call.1} parent=15 // pred_fallthru
          _
        // Predicated region
        $region25: #{tpu_custom_call.1} parent=15 // pred_check
          %p484 = pneg %p108
        $region26: #{tpu_custom_call.1} parent=15 // pred_check_branch
          %486 = sbr.rel (%p484) target = $region28
        $region27: #{tpu_custom_call.1} parent=15 // pred_region
          %p487 = scmp.lt.s32.totalorder %s31, 1
          %s488 = scalar_select %p487, %s31, 1
          %s489 = smul.addr %s488, 8
          %s490 = scalar_lea.vmem %s2, %s489
        $region28: #{tpu_custom_call.1} parent=15 // pred_fallthru
          _
        // Predicated region
        $region29: #{tpu_custom_call.1} parent=15 // pred_check
          %p491 = pneg %p134
        $region30: #{tpu_custom_call.1} parent=15 // pred_check_branch
          %493 = sbr.rel (%p491) target = $region32
        $region31: #{tpu_custom_call.1} parent=15 // pred_region
          %p494 = scmp.lt.s32.totalorder %s32, 1
          %s495 = scalar_select %p494, %s32, 1
          %s496 = smul.addr %s495, 4
          %s497 = smul.addr %s496, 4
          %s498 = scalar_lea.vmem %s3, %s497
        $region32: #{tpu_custom_call.1} parent=15 // pred_fallthru
          _
        // Predicated region
        $region33: #{tpu_custom_call.1} parent=15 // pred_check
          %p499 = pneg %p160
        $region34: #{tpu_custom_call.1} parent=15 // pred_check_branch
          %501 = sbr.rel (%p499) target = $region36
        $region35: #{tpu_custom_call.1} parent=15 // pred_region
          %p502 = scmp.lt.s32.totalorder %s32, 1
          %s503 = scalar_select %p502, %s32, 1
          %s504 = scalar_lea.vmem %s4, %s503
        $region36: #{tpu_custom_call.1} parent=15 // pred_fallthru
          _
        // Predicated region
        $region37: #{tpu_custom_call.1} parent=15 // pred_check
          %p505 = pneg %p186
        $region38: #{tpu_custom_call.1} parent=15 // pred_check_branch
          %507 = sbr.rel (%p505) target = $region40
        $region39: #{tpu_custom_call.1} parent=15 // pred_region
          %p508 = scmp.lt.s32.totalorder %s32, 1
          %s509 = scalar_select %p508, %s32, 1
          %s510 = smul.addr %s509, 4
          %s511 = smul.addr %s510, 4
          %s512 = scalar_lea.vmem %s5, %s511
        $region40: #{tpu_custom_call.1} parent=15 // pred_fallthru
          _
        // Predicated region
        $region41: #{tpu_custom_call.1} parent=15 // pred_check
          %p513 = pneg %p212
        $region42: #{tpu_custom_call.1} parent=15 // pred_check_branch
          %515 = sbr.rel (%p513) target = $region44
        $region43: #{tpu_custom_call.1} parent=15 // pred_region
          %p516 = scmp.lt.s32.totalorder %s32, 1
          %s517 = scalar_select %p516, %s32, 1
          %s518 = scalar_lea.vmem %s6, %s517
        $region44: #{tpu_custom_call.1} parent=15 // pred_fallthru
          _
        // Predicated region
        $region45: #{tpu_custom_call.1} parent=15 // pred_check
          %p519 = pneg %p238
        $region46: #{tpu_custom_call.1} parent=15 // pred_check_branch
          %521 = sbr.rel (%p519) target = $region48
        $region47: #{tpu_custom_call.1} parent=15 // pred_region
          %p522 = scmp.lt.s32.totalorder %s32, 1
          %s523 = scalar_select %p522, %s32, 1
          %s524 = scalar_lea.vmem %s7, %s523
        $region48: #{tpu_custom_call.1} parent=15 // pred_fallthru
          _
        // Predicated region
        $region49: #{tpu_custom_call.1} parent=15 // pred_check
          %p525 = pneg %p264
        $region50: #{tpu_custom_call.1} parent=15 // pred_check_branch
          %527 = sbr.rel (%p525) target = $region52
        $region51: #{tpu_custom_call.1} parent=15 // pred_region
          %p528 = scmp.lt.s32.totalorder %s32, 1
          %s529 = scalar_select %p528, %s32, 1
          %s530 = scalar_lea.vmem %s8, %s529
        $region52: #{tpu_custom_call.1} parent=15 // pred_fallthru
          _
        // Predicated region
        $region53: #{tpu_custom_call.1} parent=15 // pred_check
          %p531 = pneg %p290
        $region54: #{tpu_custom_call.1} parent=15 // pred_check_branch
          %533 = sbr.rel (%p531) target = $region56
        $region55: #{tpu_custom_call.1} parent=15 // pred_region
          %p534 = scmp.lt.s32.totalorder %s32, 1
          %s535 = scalar_select %p534, %s32, 1
          %s536 = smul.addr %s535, 36
          %s537 = smul.addr %s536, 4
          %s538 = scalar_lea.vmem %s9, %s537
        $region56: #{tpu_custom_call.1} parent=15 // pred_fallthru
          _
        // Predicated region
        $region57: #{tpu_custom_call.1} parent=15 // pred_check
          %p539 = pneg %p316
        $region58: #{tpu_custom_call.1} parent=15 // pred_check_branch
          %541 = sbr.rel (%p539) target = $region60
        $region59: #{tpu_custom_call.1} parent=15 // pred_region
          %p542 = scmp.lt.s32.totalorder %s32, 1
          %s543 = scalar_select %p542, %s32, 1
          %s544 = scalar_lea.vmem %s10, %s543
        $region60: #{tpu_custom_call.1} parent=15 // pred_fallthru
          _
        // Predicated region
        $region61: #{tpu_custom_call.1} parent=15 // pred_check
          %p545 = pneg %p342
        $region62: #{tpu_custom_call.1} parent=15 // pred_check_branch
          %547 = sbr.rel (%p545) target = $region64
        $region63: #{tpu_custom_call.1} parent=15 // pred_region
          %p548 = scmp.lt.s32.totalorder %s32, 1
          %s549 = scalar_select %p548, %s32, 1
          %s550 = smul.addr %s549, 8
          %s551 = smul.addr %s550, 4
          %s552 = scalar_lea.vmem %s11, %s551
        $region64: #{tpu_custom_call.1} parent=15 // pred_fallthru
          _
        // Predicated region
        $region65: #{tpu_custom_call.1} parent=15 // pred_check
          %p553 = pneg %p368
        $region66: #{tpu_custom_call.1} parent=15 // pred_check_branch
          %555 = sbr.rel (%p553) target = $region68
        $region67: #{tpu_custom_call.1} parent=15 // pred_region
          %p556 = scmp.lt.s32.totalorder %s32, 1
          %s557 = scalar_select %p556, %s32, 1
          %s558 = scalar_lea.vmem %s12, %s557
        $region68: #{tpu_custom_call.1} parent=15 // pred_fallthru
          _
        // Predicated region
        $region69: #{tpu_custom_call.1} parent=15 // pred_check
          %p559 = pneg %p394
        $region70: #{tpu_custom_call.1} parent=15 // pred_check_branch
          %561 = sbr.rel (%p559) target = $region72
        $region71: #{tpu_custom_call.1} parent=15 // pred_region
          %p562 = scmp.lt.s32.totalorder %s32, 1
          %s563 = scalar_select %p562, %s32, 1
          %s564 = scalar_lea.vmem %s13, %s563
        $region72: #{tpu_custom_call.1} parent=15 // pred_fallthru
          _
        // Predicated region
        $region73: #{tpu_custom_call.1} parent=15 // pred_check
          %p565 = pneg %p420
        $region74: #{tpu_custom_call.1} parent=15 // pred_check_branch
          %567 = sbr.rel (%p565) target = $region76
        $region75: #{tpu_custom_call.1} parent=15 // pred_region
          %p568 = scmp.lt.s32.totalorder %s32, 1
          %s569 = scalar_select %p568, %s32, 1
          %s570 = scalar_lea.vmem %s14, %s569
        $region76: #{tpu_custom_call.1} parent=15 // pred_fallthru
          _
      $region16: #{tpu_custom_call.1} parent=5 // pred_fallthru
        _
      %p571 = scmp.le.s32.totalorder 1, %s24
      %p572 = scmp.lt.s32.totalorder %s24, 5
      %p573 = pnand %p571, %p572
      %p574 = pneg %p573
      // Predicated region
      $region77: #{tpu_custom_call.1} parent=5 // pred_check
        _
      $region78: #{tpu_custom_call.1} parent=5 // pred_check_branch
        %576 = sbr.rel (%p573) target = $region80
      $region79: #{tpu_custom_call.1} parent=5 // pred_region
        %s577 = ssub.s32 %s24, 1
        %p578 = scmp.lt.s32.totalorder %s33, 1
        %s579 = scalar_select %p578, %s33, 1
        %s580 = smul.addr %s579, 8
        %s581 = scalar_lea.vmem %s0, %s580
        %p582 = pneg %p62
        %p583 = pneg %p59
        %p584 = scmp.lt.s32.totalorder %s33, 1
        %s585 = scalar_select %p584, %s33, 1
        %s586 = scalar_lea.vmem %s1, %s585
        %p587 = pneg %p88
        %p588 = pneg %p85
        %p589 = scmp.lt.s32.totalorder %s33, 1
        %s590 = scalar_select %p589, %s33, 1
        %s591 = smul.addr %s590, 8
        %s592 = scalar_lea.vmem %s2, %s591
        %p593 = pneg %p114
        %p594 = pneg %p111
        %p595 = scmp.lt.s32.totalorder %s34, 1
        %s596 = scalar_select %p595, %s34, 1
        %s597 = smul.addr %s596, 4
        %s598 = smul.addr %s597, 4
        %s599 = scalar_lea.vmem %s3, %s598
        %p600 = pneg %p140
        %p601 = pneg %p137
        %p602 = scmp.lt.s32.totalorder %s34, 1
        %s603 = scalar_select %p602, %s34, 1
        %s604 = scalar_lea.vmem %s4, %s603
        %p605 = pneg %p166
        %p606 = pneg %p163
        %p607 = scmp.lt.s32.totalorder %s34, 1
        %s608 = scalar_select %p607, %s34, 1
        %s609 = smul.addr %s608, 4
        %s610 = smul.addr %s609, 4
        %s611 = scalar_lea.vmem %s5, %s610
        %p612 = pneg %p192
        %p613 = pneg %p189
        %p614 = scmp.lt.s32.totalorder %s34, 1
        %s615 = scalar_select %p614, %s34, 1
        %s616 = scalar_lea.vmem %s6, %s615
        %p617 = pneg %p218
        %p618 = pneg %p215
        %p619 = scmp.lt.s32.totalorder %s34, 1
        %s620 = scalar_select %p619, %s34, 1
        %s621 = scalar_lea.vmem %s7, %s620
        %p622 = pneg %p244
        %p623 = pneg %p241
        %p624 = scmp.lt.s32.totalorder %s34, 1
        %s625 = scalar_select %p624, %s34, 1
        %s626 = scalar_lea.vmem %s8, %s625
        %p627 = pneg %p270
        %p628 = pneg %p267
        %p629 = scmp.lt.s32.totalorder %s34, 1
        %s630 = scalar_select %p629, %s34, 1
        %s631 = smul.addr %s630, 36
        %s632 = smul.addr %s631, 4
        %s633 = scalar_lea.vmem %s9, %s632
        %p634 = pneg %p296
        %p635 = pneg %p293
        %p636 = scmp.lt.s32.totalorder %s34, 1
        %s637 = scalar_select %p636, %s34, 1
        %s638 = scalar_lea.vmem %s10, %s637
        %p639 = pneg %p322
        %p640 = pneg %p319
        %p641 = scmp.lt.s32.totalorder %s34, 1
        %s642 = scalar_select %p641, %s34, 1
        %s643 = smul.addr %s642, 8
        %s644 = smul.addr %s643, 4
        %s645 = scalar_lea.vmem %s11, %s644
        %p646 = pneg %p348
        %p647 = pneg %p345
        %p648 = scmp.lt.s32.totalorder %s34, 1
        %s649 = scalar_select %p648, %s34, 1
        %s650 = scalar_lea.vmem %s12, %s649
        %p651 = pneg %p374
        %p652 = pneg %p371
        %p653 = scmp.lt.s32.totalorder %s34, 1
        %s654 = scalar_select %p653, %s34, 1
        %s655 = scalar_lea.vmem %s13, %s654
        %p656 = pneg %p400
        %p657 = pneg %p397
        %p658 = scmp.lt.s32.totalorder %s34, 1
        %s659 = scalar_select %p658, %s34, 1
        %s660 = scalar_lea.vmem %s14, %s659
        %p661 = pneg %p426
        %p662 = pneg %p423
        %p663 = pneg %p452
        %p664 = pneg %p449
        %s665 = sand.u32 %s439, 1
        %s666 = scalar_lea.sflag [#allocation3], %s665
        %s667 = sand.u32 %s439, 1
        %s668 = smul.addr %s667, 8
        %s669 = scalar_lea.vmem [#allocation2], %s668
        %p670 = scmp.lt.s32.totalorder %s33, 1
        %s671 = scalar_select %p670, %s33, 1
        %s672 = smul.addr %s671, 8
        %s673 = scalar_lea.vmem %s0, %s672
        %p674 = scmp.lt.s32.totalorder %s33, 1
        %s675 = scalar_select %p674, %s33, 1
        %s676 = scalar_lea.vmem %s1, %s675
        %p677 = scmp.lt.s32.totalorder %s33, 1
        %s678 = scalar_select %p677, %s33, 1
        %s679 = smul.addr %s678, 8
        %s680 = scalar_lea.vmem %s2, %s679
        %p681 = scmp.lt.s32.totalorder %s34, 1
        %s682 = scalar_select %p681, %s34, 1
        %s683 = smul.addr %s682, 4
        %s684 = smul.addr %s683, 4
        %s685 = scalar_lea.vmem %s3, %s684
        %p686 = scmp.lt.s32.totalorder %s34, 1
        %s687 = scalar_select %p686, %s34, 1
        %s688 = scalar_lea.vmem %s4, %s687
        %p689 = scmp.lt.s32.totalorder %s34, 1
        %s690 = scalar_select %p689, %s34, 1
        %s691 = smul.addr %s690, 4
        %s692 = smul.addr %s691, 4
        %s693 = scalar_lea.vmem %s5, %s692
        %p694 = scmp.lt.s32.totalorder %s34, 1
        %s695 = scalar_select %p694, %s34, 1
        %s696 = scalar_lea.vmem %s6, %s695
        %p697 = scmp.lt.s32.totalorder %s34, 1
        %s698 = scalar_select %p697, %s34, 1
        %s699 = scalar_lea.vmem %s7, %s698
        %p700 = scmp.lt.s32.totalorder %s34, 1
        %s701 = scalar_select %p700, %s34, 1
        %s702 = scalar_lea.vmem %s8, %s701
        %p703 = scmp.lt.s32.totalorder %s34, 1
        %s704 = scalar_select %p703, %s34, 1
        %s705 = smul.addr %s704, 36
        %s706 = smul.addr %s705, 4
        %s707 = scalar_lea.vmem %s9, %s706
        %p708 = scmp.lt.s32.totalorder %s34, 1
        %s709 = scalar_select %p708, %s34, 1
        %s710 = scalar_lea.vmem %s10, %s709
        %p711 = scmp.lt.s32.totalorder %s34, 1
        %s712 = scalar_select %p711, %s34, 1
        %s713 = smul.addr %s712, 8
        %s714 = smul.addr %s713, 4
        %s715 = scalar_lea.vmem %s11, %s714
        %p716 = scmp.lt.s32.totalorder %s34, 1
        %s717 = scalar_select %p716, %s34, 1
        %s718 = scalar_lea.vmem %s12, %s717
        %p719 = scmp.lt.s32.totalorder %s34, 1
        %s720 = scalar_select %p719, %s34, 1
        %s721 = scalar_lea.vmem %s13, %s720
        %p722 = scmp.lt.s32.totalorder %s34, 1
        %s723 = scalar_select %p722, %s34, 1
        %s724 = scalar_lea.vmem %s14, %s723
        %p726 = scmp.eq.s32.totalorder %s34, 0
        // Predicated region
        $region81: #{tpu_custom_call.1} parent=79 // pred_check
          %p727 = pneg %p726
        $region82: #{tpu_custom_call.1} parent=79 // pred_check_branch
          %729 = sbr.rel (%p727) target = $region84
        $region83: #{tpu_custom_call.1} parent=79 // pred_region
          %v730 = vld [vmem:[%s673] sm:$0xff]
          %vm731 = vcmask 261120
          %732 = vst.msk [vmem:[%s669] sm:$0xff] %vm731, %v730
        $region84: #{tpu_custom_call.1} parent=79 // pred_fallthru
          _
        %v733 = vld [vmem:[%s685] sm:$0xf]
        %v734 = vld [vmem:[%s685 + $0x4] sm:$0xf]
        %v735 = vld [vmem:[%s685 + $0x8] sm:$0xf]
        %v736 = vld [vmem:[%s685 + $0xc] sm:$0xf]
        %v737 = vld [vmem:[%s688] sm:$0x1]
        %v738 = vld [vmem:[%s693] sm:$0xf]
        %v739 = vld [vmem:[%s693 + $0x4] sm:$0xf]
        %v740 = vld [vmem:[%s693 + $0x8] sm:$0xf]
        %v741 = vld [vmem:[%s693 + $0xc] sm:$0xf]
        %v742 = vld [vmem:[%s696] sm:$0x1]
        %v743 = vld [vmem:[%s699] sm:$0x1]
        %v744 = vld [vmem:[%s702] sm:$0x1]
        %v745 = vld [vmem:[%s707] sm:$0xf]
        %v746 = vld [vmem:[%s707 + $0x4] sm:$0xf]
        %v747 = vld [vmem:[%s707 + $0x8] sm:$0xf]
        %v748 = vld [vmem:[%s707 + $0xc] sm:$0xf]
        %v749 = vld [vmem:[%s707 + $0x10] sm:$0xf]
        %v750 = vld [vmem:[%s707 + $0x14] sm:$0xf]
        %v751 = vld [vmem:[%s707 + $0x18] sm:$0xf]
        %v752 = vld [vmem:[%s707 + $0x1c] sm:$0xf]
        %v753 = vld [vmem:[%s707 + $0x20] sm:$0xf]
        %v754 = vld [vmem:[%s707 + $0x24] sm:$0xf]
        %v755 = vld [vmem:[%s707 + $0x28] sm:$0xf]
        %v756 = vld [vmem:[%s707 + $0x2c] sm:$0xf]
        %v757 = vld [vmem:[%s707 + $0x30] sm:$0xf]
        %v758 = vld [vmem:[%s707 + $0x34] sm:$0xf]
        %v759 = vld [vmem:[%s707 + $0x38] sm:$0xf]
        %v760 = vld [vmem:[%s707 + $0x3c] sm:$0xf]
        %v761 = vld [vmem:[%s707 + $0x40] sm:$0xf]
        %v762 = vld [vmem:[%s707 + $0x44] sm:$0xf]
        %v763 = vld [vmem:[%s707 + $0x48] sm:$0xf]
        %v764 = vld [vmem:[%s707 + $0x4c] sm:$0xf]
        %v765 = vld [vmem:[%s707 + $0x50] sm:$0xf]
        %v766 = vld [vmem:[%s707 + $0x54] sm:$0xf]
        %v767 = vld [vmem:[%s707 + $0x58] sm:$0xf]
        %v768 = vld [vmem:[%s707 + $0x5c] sm:$0xf]
        %v769 = vld [vmem:[%s707 + $0x60] sm:$0xf]
        %v770 = vld [vmem:[%s707 + $0x64] sm:$0xf]
        %v771 = vld [vmem:[%s707 + $0x68] sm:$0xf]
        %v772 = vld [vmem:[%s707 + $0x6c] sm:$0xf]
        %v773 = vld [vmem:[%s707 + $0x70] sm:$0xf]
        %v774 = vld [vmem:[%s707 + $0x74] sm:$0xf]
        %v775 = vld [vmem:[%s707 + $0x78] sm:$0xf]
        %v776 = vld [vmem:[%s707 + $0x7c] sm:$0xf]
        %v777 = vld [vmem:[%s707 + $0x80] sm:$0xf]
        %v778 = vld [vmem:[%s707 + $0x84] sm:$0xf]
        %v779 = vld [vmem:[%s707 + $0x88] sm:$0xf]
        %v780 = vld [vmem:[%s707 + $0x8c] sm:$0xf]
        %v781 = vld [vmem:[%s710] sm:$0x1]
        %v782 = vld [vmem:[%s715] sm:$0xf]
        %v783 = vld [vmem:[%s715 + $0x4] sm:$0xf]
        %v784 = vld [vmem:[%s715 + $0x8] sm:$0xf]
        %v785 = vld [vmem:[%s715 + $0xc] sm:$0xf]
        %v786 = vld [vmem:[%s715 + $0x10] sm:$0xf]
        %v787 = vld [vmem:[%s715 + $0x14] sm:$0xf]
        %v788 = vld [vmem:[%s715 + $0x18] sm:$0xf]
        %v789 = vld [vmem:[%s715 + $0x1c] sm:$0xf]
        %v790 = vld [vmem:[%s718] sm:$0x1]
        %v791 = vld [vmem:[%s721] sm:$0x1]
        %v792 = vld [vmem:[%s724] sm:$0x1]
        %v793 = vlaneseq
        %v794 = vshrl.u32 %v793, 7
        %v795 = vld [vmem:[%s669] sm:$0xff]
        %v796 = vld [vmem:[%s676] sm:$0x1]
        %v797 = vld [vmem:[%s680] sm:$0xff]
        %v798 = vpack.c.bf16 %v795, %v795
        %v800 = vlaneseq
        %v801 = vshrl.u32 %v800, 7
        %v802 = vsub.s32 0, %v801
        %v803 = vrot.slane %v737, %v802
        %v809 = vunpack.c.l.b16 %v733
        %v810 = vunpack.c.l.b16 %v734
        %v811 = vunpack.c.l.b16 %v735
        %v812 = vunpack.c.l.b16 %v736
        %v813 = vpack.c.b16 %v810, %v809
        %v814 = vpack.c.b16 %v812, %v811
        %vm817 = vcmask 261120
        %v819 = vsel %vm817, %v798, 0
        %821 = vmatprep.subr.bf16.mxu0 0
        %822 = vmatpush1.bf16.msra.mxu0 0
        %823 = vmatprep.subr.bf16.mxu0 0
        %824 = vmatpush1.bf16.msra.mxu0 0
        %825 = vmatprep.subr.bf16.mxu0 0
        %826 = vmatpush1.bf16.msra.mxu0 0
        %827 = vmatprep.subr.bf16.mxu0 0
        %828 = vmatpush1.bf16.msra.mxu0 0
        %829 = vmatprep.subr.bf16.mxu0 0
        %830 = vmatpush1.bf16.msra.mxu0 0
        %831 = vmatprep.subr.bf16.mxu0 0
        %832 = vmatpush1.bf16.msra.mxu0 0
        %833 = vmatprep.subr.bf16.mxu0 0
        %834 = vmatpush1.bf16.msra.mxu0 %v814
        %835 = vmatprep.subr.bf16.mxu0 0
        %836 = vmatpush1.bf16.msra.mxu0 %v813
        %837 = vmatprep.subr.bf16.mxu0 0
        %838 = vmatpush2.bf16.msra.mxu0 0
        %839 = vmatprep.subr.bf16.mxu0 0
        %840 = vmatpush2.bf16.msra.mxu0 0
        %841 = vmatprep.subr.bf16.mxu0 0
        %842 = vmatpush2.bf16.msra.mxu0 0
        %843 = vmatprep.subr.bf16.mxu0 0
        %844 = vmatpush2.bf16.msra.mxu0 0
        %845 = vmatprep.subr.bf16.mxu0 0
        %846 = vmatpush2.bf16.msra.mxu0 0
        %847 = vmatprep.subr.bf16.mxu0 0
        %848 = vmatpush2.bf16.msra.mxu0 0
        %849 = vmatprep.subr.bf16.mxu0 0
        %850 = vmatpush2.bf16.msra.mxu0 0
        %851 = vmatprep.subr.bf16.mxu0 0
        %852 = vmatpush2.bf16.msra.mxu0 0
        %853 = vmatprep.mubr.bf16.mxu0 0
        %854 = vmatmul.mubr.bf16.gmra.mxu0 %v819
        %v855 = vpop.f32.mrf.mxu0
        %v856 = vadd.f32 %v803, %v855
        %v857 = vpop.f32.mrf.mxu0
        %v858 = vpop.f32.mrf.mxu0
        %v859 = vpop.f32.mrf.mxu0
        %860 = vdwg.mxu0
        %v861 = vpack.c.bf16 %v856, %v856
        %v863 = vlaneseq
        %v864 = vshrl.u32 %v863, 7
        %v865 = vsub.s32 0, %v864
        %v866 = vrot.slane %v796, %v865
        %869 = vrot.lane.b32.xlu0 %v861, 96
        %v870 = vpop.permute.xlu0 %869
        %vm871 = vcmask 130048
        %v873 = vsel %vm871, %v861, 0
        %v876 = vsel %vm871, %v870, 0
        %878 = vmatprep.subr.bf16.mxu0 0
        %879 = vmatpush1.bf16.xpose.msra.mxu0 0
        %880 = vmatprep.subr.bf16.mxu0 0
        %881 = vmatpush1.bf16.xpose.msra.mxu0 0
        %882 = vmatprep.subr.bf16.mxu0 0
        %883 = vmatpush1.bf16.xpose.msra.mxu0 0
        %884 = vmatprep.subr.bf16.mxu0 0
        %885 = vmatpush1.bf16.xpose.msra.mxu0 0
        %886 = vmatprep.subr.bf16.mxu0 0
        %887 = vmatpush1.bf16.xpose.msra.mxu0 0
        %888 = vmatprep.subr.bf16.mxu0 0
        %889 = vmatpush1.bf16.xpose.msra.mxu0 0
        %890 = vmatprep.subr.bf16.mxu0 0
        %891 = vmatpush1.bf16.xpose.msra.mxu0 0
        %892 = vmatprep.subr.bf16.mxu0 0
        %893 = vmatpush1.bf16.xpose.msra.mxu0 %v876
        %894 = vmatprep.subr.bf16.mxu0 0
        %895 = vmatpush2.bf16.xpose.msra.mxu0 0
        %896 = vmatprep.subr.bf16.mxu0 0
        %897 = vmatpush2.bf16.xpose.msra.mxu0 0
        %898 = vmatprep.subr.bf16.mxu0 0
        %899 = vmatpush2.bf16.xpose.msra.mxu0 0
        %900 = vmatprep.subr.bf16.mxu0 0
        %901 = vmatpush2.bf16.xpose.msra.mxu0 0
        %902 = vmatprep.subr.bf16.mxu0 0
        %903 = vmatpush2.bf16.xpose.msra.mxu0 0
        %904 = vmatprep.subr.bf16.mxu0 0
        %905 = vmatpush2.bf16.xpose.msra.mxu0 0
        %906 = vmatprep.subr.bf16.mxu0 0
        %907 = vmatpush2.bf16.xpose.msra.mxu0 0
        %908 = vmatprep.subr.bf16.mxu0 0
        %909 = vmatpush2.bf16.xpose.msra.mxu0 0
        %910 = vmatprep.mubr.bf16.mxu0 0
        %911 = vmatmul.mubr.bf16.gmra.mxu0 %v873
        %v912 = vpop.f32.mrf.mxu0
        %v913 = vadd.f32 %v866, %v912
        %v914 = vpop.f32.mrf.mxu0
        %v915 = vpop.f32.mrf.mxu0
        %v916 = vpop.f32.mrf.mxu0
        %917 = vdwg.mxu0
        %vm918 = vcmask 64512
        %v919 = vsel %vm918, %v913, -inf
        %920 = vmax.xlane.f32.xlu0 %v919
        %v921 = vpop.xlane.xlu0 %920
        %v922 = vsub.f32 %v913, %v921
        %v923 = vmul.f32 %v922, 1.442695
        %v924 = vpow.pop %v923
        %v925 = vsel %vm918, %v924, 0.0
        %926 = vadd.xlane.f32.xlu0 %v925
        %v927 = vpop.xlane.xlu0 %926
        %v928 = vrcp.pop %v927
        %v929 = vmul.f32 %v924, %v928
        %v930 = vpack.c.bf16 %v929, %v929
        %931 = vrot.lane.b32.xlu0 %v861, 64
        %v932 = vpop.permute.xlu0 %931
        %v934 = vsel %vm918, %v930, 0
        %vm936 = vcmask 1043456
        %v938 = vsel %vm936, %v932, 0
        %940 = vmatprep.subr.bf16.mxu0 0
        %941 = vmatpush1.bf16.msra.mxu0 0
        %942 = vmatprep.subr.bf16.mxu0 0
        %943 = vmatpush1.bf16.msra.mxu0 0
        %944 = vmatprep.subr.bf16.mxu0 0
        %945 = vmatpush1.bf16.msra.mxu0 0
        %946 = vmatprep.subr.bf16.mxu0 0
        %947 = vmatpush1.bf16.msra.mxu0 0
        %948 = vmatprep.subr.bf16.mxu0 0
        %949 = vmatpush1.bf16.msra.mxu0 0
        %950 = vmatprep.subr.bf16.mxu0 0
        %951 = vmatpush1.bf16.msra.mxu0 0
        %952 = vmatprep.subr.bf16.mxu0 0
        %953 = vmatpush1.bf16.msra.mxu0 0
        %954 = vmatprep.subr.bf16.mxu0 0
        %955 = vmatpush1.bf16.msra.mxu0 %v938
        %956 = vmatprep.subr.bf16.mxu0 0
        %957 = vmatpush2.bf16.msra.mxu0 0
        %958 = vmatprep.subr.bf16.mxu0 0
        %959 = vmatpush2.bf16.msra.mxu0 0
        %960 = vmatprep.subr.bf16.mxu0 0
        %961 = vmatpush2.bf16.msra.mxu0 0
        %962 = vmatprep.subr.bf16.mxu0 0
        %963 = vmatpush2.bf16.msra.mxu0 0
        %964 = vmatprep.subr.bf16.mxu0 0
        %965 = vmatpush2.bf16.msra.mxu0 0
        %966 = vmatprep.subr.bf16.mxu0 0
        %967 = vmatpush2.bf16.msra.mxu0 0
        %968 = vmatprep.subr.bf16.mxu0 0
        %969 = vmatpush2.bf16.msra.mxu0 0
        %970 = vmatprep.subr.bf16.mxu0 0
        %971 = vmatpush2.bf16.msra.mxu0 0
        %972 = vmatprep.mubr.bf16.mxu0 0
        %973 = vmatmul.mubr.bf16.gmra.mxu0 %v934
        %v974 = vpop.f32.mrf.mxu0
        %v975 = vadd.f32 0.0, %v974
        %v976 = vpop.f32.mrf.mxu0
        %v977 = vpop.f32.mrf.mxu0
        %v978 = vpop.f32.mrf.mxu0
        %979 = vdwg.mxu0
        %v980 = vpack.c.bf16 %v975, %v975
        %981 = vrot.lane.b32.xlu0 %v861, 112
        %v982 = vpop.permute.xlu0 %981
        %983 = vrot.lane.b32.xlu0 %v861, 80
        %v984 = vpop.permute.xlu0 %983
        %v986 = vsel %vm871, %v982, 0
        %v989 = vsel %vm871, %v984, 0
        %991 = vmatprep.subr.bf16.mxu0 0
        %992 = vmatpush1.bf16.xpose.msra.mxu0 0
        %993 = vmatprep.subr.bf16.mxu0 0
        %994 = vmatpush1.bf16.xpose.msra.mxu0 0
        %995 = vmatprep.subr.bf16.mxu0 0
        %996 = vmatpush1.bf16.xpose.msra.mxu0 0
        %997 = vmatprep.subr.bf16.mxu0 0
        %998 = vmatpush1.bf16.xpose.msra.mxu0 0
        %999 = vmatprep.subr.bf16.mxu0 0
        %1000 = vmatpush1.bf16.xpose.msra.mxu0 0
        %1001 = vmatprep.subr.bf16.mxu0 0
        %1002 = vmatpush1.bf16.xpose.msra.mxu0 0
        %1003 = vmatprep.subr.bf16.mxu0 0
        %1004 = vmatpush1.bf16.xpose.msra.mxu0 0
        %1005 = vmatprep.subr.bf16.mxu0 0
        %1006 = vmatpush1.bf16.xpose.msra.mxu0 %v989
        %1007 = vmatprep.subr.bf16.mxu0 0
        %1008 = vmatpush2.bf16.xpose.msra.mxu0 0
        %1009 = vmatprep.subr.bf16.mxu0 0
        %1010 = vmatpush2.bf16.xpose.msra.mxu0 0
        %1011 = vmatprep.subr.bf16.mxu0 0
        %1012 = vmatpush2.bf16.xpose.msra.mxu0 0
        %1013 = vmatprep.subr.bf16.mxu0 0
        %1014 = vmatpush2.bf16.xpose.msra.mxu0 0
        %1015 = vmatprep.subr.bf16.mxu0 0
        %1016 = vmatpush2.bf16.xpose.msra.mxu0 0
        %1017 = vmatprep.subr.bf16.mxu0 0
        %1018 = vmatpush2.bf16.xpose.msra.mxu0 0
        %1019 = vmatprep.subr.bf16.mxu0 0
        %1020 = vmatpush2.bf16.xpose.msra.mxu0 0
        %1021 = vmatprep.subr.bf16.mxu0 0
        %1022 = vmatpush2.bf16.xpose.msra.mxu0 0
        %1023 = vmatprep.mubr.bf16.mxu0 0
        %1024 = vmatmul.mubr.bf16.gmra.mxu0 %v986
        %v1025 = vpop.f32.mrf.mxu0
        %v1026 = vadd.f32 %v866, %v1025
        %v1027 = vpop.f32.mrf.mxu0
        %v1028 = vpop.f32.mrf.mxu0
        %v1029 = vpop.f32.mrf.mxu0
        %1030 = vdwg.mxu0
        %v1031 = vsel %vm918, %v1026, -inf
        %1032 = vmax.xlane.f32.xlu0 %v1031
        %v1033 = vpop.xlane.xlu0 %1032
        %v1034 = vsub.f32 %v1026, %v1033
        %v1035 = vmul.f32 %v1034, 1.442695
        %v1036 = vpow.pop %v1035
        %v1037 = vsel %vm918, %v1036, 0.0
        %1038 = vadd.xlane.f32.xlu0 %v1037
        %v1039 = vpop.xlane.xlu0 %1038
        %v1040 = vrcp.pop %v1039
        %v1041 = vmul.f32 %v1036, %v1040
        %v1042 = vpack.c.bf16 %v1041, %v1041
        %1043 = vrot.lane.b32.xlu0 %v861, 48
        %v1044 = vpop.permute.xlu0 %1043
        %v1046 = vsel %vm918, %v1042, 0
        %v1049 = vsel %vm936, %v1044, 0
        %1051 = vmatprep.subr.bf16.mxu0 0
        %1052 = vmatpush1.bf16.msra.mxu0 0
        %1053 = vmatprep.subr.bf16.mxu0 0
        %1054 = vmatpush1.bf16.msra.mxu0 0
        %1055 = vmatprep.subr.bf16.mxu0 0
        %1056 = vmatpush1.bf16.msra.mxu0 0
        %1057 = vmatprep.subr.bf16.mxu0 0
        %1058 = vmatpush1.bf16.msra.mxu0 0
        %1059 = vmatprep.subr.bf16.mxu0 0
        %1060 = vmatpush1.bf16.msra.mxu0 0
        %1061 = vmatprep.subr.bf16.mxu0 0
        %1062 = vmatpush1.bf16.msra.mxu0 0
        %1063 = vmatprep.subr.bf16.mxu0 0
        %1064 = vmatpush1.bf16.msra.mxu0 0
        %1065 = vmatprep.subr.bf16.mxu0 0
        %1066 = vmatpush1.bf16.msra.mxu0 %v1049
        %1067 = vmatprep.subr.bf16.mxu0 0
        %1068 = vmatpush2.bf16.msra.mxu0 0
        %1069 = vmatprep.subr.bf16.mxu0 0
        %1070 = vmatpush2.bf16.msra.mxu0 0
        %1071 = vmatprep.subr.bf16.mxu0 0
        %1072 = vmatpush2.bf16.msra.mxu0 0
        %1073 = vmatprep.subr.bf16.mxu0 0
        %1074 = vmatpush2.bf16.msra.mxu0 0
        %1075 = vmatprep.subr.bf16.mxu0 0
        %1076 = vmatpush2.bf16.msra.mxu0 0
        %1077 = vmatprep.subr.bf16.mxu0 0
        %1078 = vmatpush2.bf16.msra.mxu0 0
        %1079 = vmatprep.subr.bf16.mxu0 0
        %1080 = vmatpush2.bf16.msra.mxu0 0
        %1081 = vmatprep.subr.bf16.mxu0 0
        %1082 = vmatpush2.bf16.msra.mxu0 0
        %1083 = vmatprep.mubr.bf16.mxu0 0
        %1084 = vmatmul.mubr.bf16.gmra.mxu0 %v1046
        %v1085 = vpop.f32.mrf.mxu0
        %v1086 = vadd.f32 0.0, %v1085
        %v1087 = vpop.f32.mrf.mxu0
        %v1088 = vpop.f32.mrf.mxu0
        %v1089 = vpop.f32.mrf.mxu0
        %1090 = vdwg.mxu0
        %v1091 = vpack.c.bf16 %v1086, %v1086
        %v1094 = vunpack.c.l.b16 %v740
        %v1095 = vunpack.c.l.b16 %v741
        %v1096 = vpack.c.b16 %v1095, %v1094
        %v1099 = vsel %vm871, %v1091, 0
        %1101 = vmatprep.subr.bf16.mxu0 0
        %1102 = vmatpush1.bf16.msra.mxu0 0
        %1103 = vmatprep.subr.bf16.mxu0 0
        %1104 = vmatpush1.bf16.msra.mxu0 0
        %1105 = vmatprep.subr.bf16.mxu0 0
        %1106 = vmatpush1.bf16.msra.mxu0 0
        %1107 = vmatprep.subr.bf16.mxu0 0
        %1108 = vmatpush1.bf16.msra.mxu0 0
        %1109 = vmatprep.subr.bf16.mxu0 0
        %1110 = vmatpush1.bf16.msra.mxu0 0
        %1111 = vmatprep.subr.bf16.mxu0 0
        %1112 = vmatpush1.bf16.msra.mxu0 0
        %1113 = vmatprep.subr.bf16.mxu0 0
        %1114 = vmatpush1.bf16.msra.mxu0 0
        %1115 = vmatprep.subr.bf16.mxu0 0
        %1116 = vmatpush1.bf16.msra.mxu0 %v1096
        %1117 = vmatprep.subr.bf16.mxu0 0
        %1118 = vmatpush2.bf16.msra.mxu0 0
        %1119 = vmatprep.subr.bf16.mxu0 0
        %1120 = vmatpush2.bf16.msra.mxu0 0
        %1121 = vmatprep.subr.bf16.mxu0 0
        %1122 = vmatpush2.bf16.msra.mxu0 0
        %1123 = vmatprep.subr.bf16.mxu0 0
        %1124 = vmatpush2.bf16.msra.mxu0 0
        %1125 = vmatprep.subr.bf16.mxu0 0
        %1126 = vmatpush2.bf16.msra.mxu0 0
        %1127 = vmatprep.subr.bf16.mxu0 0
        %1128 = vmatpush2.bf16.msra.mxu0 0
        %1129 = vmatprep.subr.bf16.mxu0 0
        %1130 = vmatpush2.bf16.msra.mxu0 0
        %1131 = vmatprep.subr.bf16.mxu0 0
        %1132 = vmatpush2.bf16.msra.mxu0 0
        %1133 = vmatprep.mubr.bf16.mxu0 0
        %1134 = vmatmul.mubr.bf16.gmra.mxu0 %v1099
        %v1135 = vpop.f32.mrf.mxu0
        %v1136 = vadd.f32 0.0, %v1135
        %v1137 = vpop.f32.mrf.mxu0
        %v1138 = vpop.f32.mrf.mxu0
        %v1139 = vpop.f32.mrf.mxu0
        %1140 = vdwg.mxu0
        %v1143 = vunpack.c.l.b16 %v738
        %v1144 = vunpack.c.l.b16 %v739
        %v1145 = vpack.c.b16 %v1144, %v1143
        %v1148 = vsel %vm871, %v980, 0
        %1150 = vmatprep.subr.bf16.mxu0 0
        %1151 = vmatpush1.bf16.msra.mxu0 0
        %1152 = vmatprep.subr.bf16.mxu0 0
        %1153 = vmatpush1.bf16.msra.mxu0 0
        %1154 = vmatprep.subr.bf16.mxu0 0
        %1155 = vmatpush1.bf16.msra.mxu0 0
        %1156 = vmatprep.subr.bf16.mxu0 0
        %1157 = vmatpush1.bf16.msra.mxu0 0
        %1158 = vmatprep.subr.bf16.mxu0 0
        %1159 = vmatpush1.bf16.msra.mxu0 0
        %1160 = vmatprep.subr.bf16.mxu0 0
        %1161 = vmatpush1.bf16.msra.mxu0 0
        %1162 = vmatprep.subr.bf16.mxu0 0
        %1163 = vmatpush1.bf16.msra.mxu0 0
        %1164 = vmatprep.subr.bf16.mxu0 0
        %1165 = vmatpush1.bf16.msra.mxu0 %v1145
        %1166 = vmatprep.subr.bf16.mxu0 0
        %1167 = vmatpush2.bf16.msra.mxu0 0
        %1168 = vmatprep.subr.bf16.mxu0 0
        %1169 = vmatpush2.bf16.msra.mxu0 0
        %1170 = vmatprep.subr.bf16.mxu0 0
        %1171 = vmatpush2.bf16.msra.mxu0 0
        %1172 = vmatprep.subr.bf16.mxu0 0
        %1173 = vmatpush2.bf16.msra.mxu0 0
        %1174 = vmatprep.subr.bf16.mxu0 0
        %1175 = vmatpush2.bf16.msra.mxu0 0
        %1176 = vmatprep.subr.bf16.mxu0 0
        %1177 = vmatpush2.bf16.msra.mxu0 0
        %1178 = vmatprep.subr.bf16.mxu0 0
        %1179 = vmatpush2.bf16.msra.mxu0 0
        %1180 = vmatprep.subr.bf16.mxu0 0
        %1181 = vmatpush2.bf16.msra.mxu0 0
        %1182 = vmatprep.mubr.bf16.mxu0 0
        %1183 = vmatmul.mubr.bf16.gmra.mxu0 %v1148
        %v1184 = vpop.f32.mrf.mxu0
        %v1185 = vadd.f32 %v1136, %v1184
        %v1186 = vpop.f32.mrf.mxu0
        %v1187 = vpop.f32.mrf.mxu0
        %v1188 = vpop.f32.mrf.mxu0
        %1189 = vdwg.mxu0
        %v1191 = vlaneseq
        %v1192 = vshrl.u32 %v1191, 7
        %v1193 = vsub.s32 0, %v1192
        %v1194 = vrot.slane %v742, %v1193
        %v1196 = vadd.f32 %v1185, %v1194
        %v1197 = vadd.f32 %v1196, %v795
        %v1198 = vsel %vm817, %v1197, 0.0
        %1199 = vadd.xlane.f32.xlu0 %v1198
        %v1200 = vpop.xlane.xlu0 %1199
        %v1201 = vrcp.pop 32.0
        %v1202 = vmul.f32 %v1200, %v1201
        %v1203 = vsub.f32 %v1197, %v1202
        %v1204 = vmul.f32 %v1203, %v1203
        %v1205 = vsel %vm817, %v1204, 0.0
        %1206 = vadd.xlane.f32.xlu0 %v1205
        %v1207 = vpop.xlane.xlu0 %1206
        %v1208 = vmul.f32 %v1207, %v1201
        %v1209 = vadd.f32 %v1208, 1e-05
        %v1210 = vrsqrt.pop %v1209
        %v1211 = vmul.f32 %v1203, %v1210
        %v1213 = vlaneseq
        %v1214 = vshrl.u32 %v1213, 7
        %v1215 = vsub.s32 0, %v1214
        %v1216 = vrot.slane %v743, %v1215
        %v1218 = vmul.f32 %v1211, %v1216
        %v1220 = vlaneseq
        %v1221 = vshrl.u32 %v1220, 7
        %v1222 = vsub.s32 0, %v1221
        %v1223 = vrot.slane %v744, %v1222
        %v1225 = vadd.f32 %v1218, %v1223
        %1227 = vset.pattern.permute.xlu0 0
        %1228 = vperm.xlu0 %1227, %v797
        %v1229 = vpop.permute.xlu0 %1228
        %v1231 = vmul.f32 %v1225, %v1229
        %v1232 = vrot.slane %v1231, 4
        %vm1233 = vcmp.ge.s32.totalorder %v794, 4
        %v1234 = vsel %vm1233, 1, 0
        %vm1235 = vcmp.eq.s32.totalorder %v1234, 1
        %v1236 = vsel %vm1235, %v1232, 0.0
        %v1237 = vpack.c.bf16 %v1236, %v1236
        %v1238 = vrot.slane %v1231, 5
        %vm1239 = vcmp.ge.s32.totalorder %v794, 3
        %v1240 = vsel %vm1239, 1, 0
        %vm1241 = vcmp.eq.s32.totalorder %v1240, 1
        %v1242 = vsel %vm1241, %v1238, 0.0
        %v1243 = vpack.c.bf16 %v1242, %v1242
        %v1244 = vrot.slane %v1231, 6
        %vm1245 = vcmp.ge.s32.totalorder %v794, 2
        %v1246 = vsel %vm1245, 1, 0
        %vm1247 = vcmp.eq.s32.totalorder %v1246, 1
        %v1248 = vsel %vm1247, %v1244, 0.0
        %v1249 = vpack.c.bf16 %v1248, %v1248
        %v1250 = vrot.slane %v1231, 7
        %vm1251 = vcmp.ge.s32.totalorder %v794, 1
        %v1252 = vsel %vm1251, 1, 0
        %vm1253 = vcmp.eq.s32.totalorder %v1252, 1
        %v1254 = vsel %vm1253, %v1250, 0.0
        %v1255 = vpack.c.bf16 %v1254, %v1254
        %v1256 = vpack.c.bf16 %v1231, %v1231
        %v1257 = vrot.slane %v1231, 1
        %vm1258 = vcmp.lt.s32.totalorder %v794, 7
        %v1259 = vsel %vm1258, 1, 0
        %vm1260 = vcmp.eq.s32.totalorder %v1259, 1
        %v1261 = vsel %vm1260, %v1257, 0.0
        %v1262 = vpack.c.bf16 %v1261, %v1261
        %v1263 = vrot.slane %v1231, 2
        %vm1264 = vcmp.lt.s32.totalorder %v794, 6
        %v1265 = vsel %vm1264, 1, 0
        %vm1266 = vcmp.eq.s32.totalorder %v1265, 1
        %v1267 = vsel %vm1266, %v1263, 0.0
        %v1268 = vpack.c.bf16 %v1267, %v1267
        %v1269 = vrot.slane %v1231, 3
        %vm1270 = vcmp.lt.s32.totalorder %v794, 5
        %v1271 = vsel %vm1270, 1, 0
        %vm1272 = vcmp.eq.s32.totalorder %v1271, 1
        %v1273 = vsel %vm1272, %v1269, 0.0
        %v1274 = vpack.c.bf16 %v1273, %v1273
        %vm1275 = vcmp.lt.s32.totalorder %v794, 4
        %v1276 = vsel %vm1275, 1, 0
        %vm1277 = vcmp.eq.s32.totalorder %v1276, 1
        %v1278 = vsel %vm1277, %v1232, 0.0
        %v1279 = vpack.c.bf16 %v1278, %v1278
        %1281 = vrot.lane.b32.xlu0 %v1243, 32
        %v1282 = vpop.permute.xlu0 %1281
        %1284 = vrot.lane.b32.xlu0 %v1249, 64
        %v1285 = vpop.permute.xlu0 %1284
        %1287 = vrot.lane.b32.xlu0 %v1255, 96
        %v1288 = vpop.permute.xlu0 %1287
        %1290 = vrot.lane.b32.xlu0 %v1262, 32
        %v1291 = vpop.permute.xlu0 %1290
        %1293 = vrot.lane.b32.xlu0 %v1268, 64
        %v1294 = vpop.permute.xlu0 %1293
        %1296 = vrot.lane.b32.xlu0 %v1274, 96
        %v1297 = vpop.permute.xlu0 %1296
        %v1300 = vsel %vm817, %v1237, %v1282
        %vm1301 = vcmask 523264
        %v1303 = vsel %vm1301, %v1300, %v1285
        %vm1304 = vcmask 785408
        %v1306 = vsel %vm1304, %v1303, %v1288
        %v1310 = vsel %vm817, %v1256, %v1291
        %v1312 = vsel %vm1301, %v1310, %v1294
        %v1314 = vsel %vm1304, %v1312, %v1297
        %v1317 = vlaneseq
        %v1318 = vshrl.u32 %v1317, 7
        %v1319 = vsub.s32 0, %v1318
        %v1320 = vrot.slane %v781, %v1319
        %v1358 = vunpack.c.l.b16 %v745
        %v1359 = vunpack.c.l.b16 %v746
        %v1360 = vunpack.c.l.b16 %v747
        %v1361 = vunpack.c.l.b16 %v748
        %v1362 = vunpack.c.l.b16 %v749
        %v1363 = vunpack.c.l.b16 %v750
        %v1364 = vunpack.c.l.b16 %v751
        %v1365 = vunpack.c.l.b16 %v752
        %v1366 = vunpack.c.l.b16 %v753
        %v1367 = vunpack.c.l.b16 %v754
        %v1368 = vunpack.c.l.b16 %v755
        %v1369 = vunpack.c.l.b16 %v756
        %v1370 = vunpack.c.l.b16 %v757
        %v1371 = vunpack.c.l.b16 %v758
        %v1372 = vunpack.c.l.b16 %v759
        %v1373 = vunpack.c.l.b16 %v760
        %v1374 = vunpack.c.l.b16 %v761
        %v1375 = vunpack.c.l.b16 %v762
        %v1376 = vunpack.c.l.b16 %v763
        %v1377 = vunpack.c.l.b16 %v764
        %v1378 = vunpack.c.l.b16 %v765
        %v1379 = vunpack.c.l.b16 %v766
        %v1380 = vunpack.c.l.b16 %v767
        %v1381 = vunpack.c.l.b16 %v768
        %v1382 = vunpack.c.l.b16 %v769
        %v1383 = vunpack.c.l.b16 %v770
        %v1384 = vunpack.c.l.b16 %v771
        %v1385 = vunpack.c.l.b16 %v772
        %v1386 = vunpack.c.l.b16 %v773
        %v1387 = vunpack.c.l.b16 %v774
        %v1388 = vunpack.c.l.b16 %v775
        %v1389 = vunpack.c.l.b16 %v776
        %v1390 = vunpack.c.l.b16 %v777
        %v1391 = vunpack.c.l.b16 %v778
        %v1392 = vunpack.c.l.b16 %v779
        %v1393 = vunpack.c.l.b16 %v780
        %v1394 = vpack.c.b16 %v1359, %v1358
        %v1395 = vpack.c.b16 %v1361, %v1360
        %v1396 = vpack.c.b16 %v1363, %v1362
        %v1397 = vpack.c.b16 %v1365, %v1364
        %v1398 = vpack.c.b16 %v1367, %v1366
        %v1399 = vpack.c.b16 %v1369, %v1368
        %v1400 = vpack.c.b16 %v1371, %v1370
        %v1401 = vpack.c.b16 %v1373, %v1372
        %v1402 = vpack.c.b16 %v1375, %v1374
        %v1403 = vpack.c.b16 %v1377, %v1376
        %v1404 = vpack.c.b16 %v1379, %v1378
        %v1405 = vpack.c.b16 %v1381, %v1380
        %v1406 = vpack.c.b16 %v1383, %v1382
        %v1407 = vpack.c.b16 %v1385, %v1384
        %v1408 = vpack.c.b16 %v1387, %v1386
        %v1409 = vpack.c.b16 %v1389, %v1388
        %v1410 = vpack.c.b16 %v1391, %v1390
        %v1411 = vpack.c.b16 %v1393, %v1392
        %v1431 = vsel %vm817, %v1279, 0
        %1433 = vmatprep.subr.bf16.mxu0 0
        %1434 = vmatpush1.bf16.msra.mxu0 %v1401
        %1435 = vmatprep.subr.bf16.mxu0 0
        %1436 = vmatpush1.bf16.msra.mxu0 %v1400
        %1437 = vmatprep.subr.bf16.mxu0 0
        %1438 = vmatpush1.bf16.msra.mxu0 %v1399
        %1439 = vmatprep.subr.bf16.mxu0 0
        %1440 = vmatpush1.bf16.msra.mxu0 %v1398
        %1441 = vmatprep.subr.bf16.mxu0 0
        %1442 = vmatpush1.bf16.msra.mxu0 %v1397
        %1443 = vmatprep.subr.bf16.mxu0 0
        %1444 = vmatpush1.bf16.msra.mxu0 %v1396
        %1445 = vmatprep.subr.bf16.mxu0 0
        %1446 = vmatpush1.bf16.msra.mxu0 %v1395
        %1447 = vmatprep.subr.bf16.mxu0 0
        %1448 = vmatpush1.bf16.msra.mxu0 %v1394
        %1449 = vmatprep.subr.bf16.mxu0 0
        %1450 = vmatpush2.bf16.msra.mxu0 %v1409
        %1451 = vmatprep.subr.bf16.mxu0 0
        %1452 = vmatpush2.bf16.msra.mxu0 %v1408
        %1453 = vmatprep.subr.bf16.mxu0 0
        %1454 = vmatpush2.bf16.msra.mxu0 %v1407
        %1455 = vmatprep.subr.bf16.mxu0 0
        %1456 = vmatpush2.bf16.msra.mxu0 %v1406
        %1457 = vmatprep.subr.bf16.mxu0 0
        %1458 = vmatpush2.bf16.msra.mxu0 %v1405
        %1459 = vmatprep.subr.bf16.mxu0 0
        %1460 = vmatpush2.bf16.msra.mxu0 %v1404
        %1461 = vmatprep.subr.bf16.mxu0 0
        %1462 = vmatpush2.bf16.msra.mxu0 %v1403
        %1463 = vmatprep.subr.bf16.mxu0 0
        %1464 = vmatpush2.bf16.msra.mxu0 %v1402
        %1465 = vmatprep.mubr.bf16.mxu0 %v1314
        %1466 = vmatmul.mubr.bf16.gmra.mxu0 %v1306
        %v1467 = vpop.f32.mrf.mxu0
        %v1468 = vadd.f32 %v1320, %v1467
        %v1469 = vpop.f32.mrf.mxu0
        %v1470 = vpop.f32.mrf.mxu0
        %v1471 = vpop.f32.mrf.mxu0
        %1472 = vdwg.mxu0
        %1473 = vmatprep.subr.bf16.mxu0 0
        %1474 = vmatpush1.bf16.msra.mxu0 0
        %1475 = vmatprep.subr.bf16.mxu0 0
        %1476 = vmatpush1.bf16.msra.mxu0 0
        %1477 = vmatprep.subr.bf16.mxu0 0
        %1478 = vmatpush1.bf16.msra.mxu0 0
        %1479 = vmatprep.subr.bf16.mxu0 0
        %1480 = vmatpush1.bf16.msra.mxu0 0
        %1481 = vmatprep.subr.bf16.mxu0 0
        %1482 = vmatpush1.bf16.msra.mxu0 0
        %1483 = vmatprep.subr.bf16.mxu0 0
        %1484 = vmatpush1.bf16.msra.mxu0 0
        %1485 = vmatprep.subr.bf16.mxu0 0
        %1486 = vmatpush1.bf16.msra.mxu0 %v1411
        %1487 = vmatprep.subr.bf16.mxu0 0
        %1488 = vmatpush1.bf16.msra.mxu0 %v1410
        %1489 = vmatprep.subr.bf16.mxu0 0
        %1490 = vmatpush2.bf16.msra.mxu0 0
        %1491 = vmatprep.subr.bf16.mxu0 0
        %1492 = vmatpush2.bf16.msra.mxu0 0
        %1493 = vmatprep.subr.bf16.mxu0 0
        %1494 = vmatpush2.bf16.msra.mxu0 0
        %1495 = vmatprep.subr.bf16.mxu0 0
        %1496 = vmatpush2.bf16.msra.mxu0 0
        %1497 = vmatprep.subr.bf16.mxu0 0
        %1498 = vmatpush2.bf16.msra.mxu0 0
        %1499 = vmatprep.subr.bf16.mxu0 0
        %1500 = vmatpush2.bf16.msra.mxu0 0
        %1501 = vmatprep.subr.bf16.mxu0 0
        %1502 = vmatpush2.bf16.msra.mxu0 0
        %1503 = vmatprep.subr.bf16.mxu0 0
        %1504 = vmatpush2.bf16.msra.mxu0 0
        %1505 = vmatprep.mubr.bf16.mxu0 0
        %1506 = vmatmul.mubr.bf16.gmra.mxu0 %v1431
        %v1507 = vpop.f32.mrf.mxu0
        %v1508 = vadd.f32 %v1468, %v1507
        %v1509 = vpop.f32.mrf.mxu0
        %v1510 = vpop.f32.mrf.mxu0
        %v1511 = vpop.f32.mrf.mxu0
        %1512 = vdwg.mxu0
        %v1513 = vmax.f32 %v1508, 0.0
        %v1514 = vpack.c.bf16 %v1513, %v1513
        %v1516 = vlaneseq
        %v1517 = vshrl.u32 %v1516, 7
        %v1518 = vsub.s32 0, %v1517
        %v1519 = vrot.slane %v790, %v1518
        %v1529 = vunpack.c.l.b16 %v782
        %v1530 = vunpack.c.l.b16 %v783
        %v1531 = vunpack.c.l.b16 %v784
        %v1532 = vunpack.c.l.b16 %v785
        %v1533 = vunpack.c.l.b16 %v786
        %v1534 = vunpack.c.l.b16 %v787
        %v1535 = vunpack.c.l.b16 %v788
        %v1536 = vunpack.c.l.b16 %v789
        %v1537 = vpack.c.b16 %v1530, %v1529
        %v1538 = vpack.c.b16 %v1532, %v1531
        %v1539 = vpack.c.b16 %v1534, %v1533
        %v1540 = vpack.c.b16 %v1536, %v1535
        %v1546 = vsel %vm1301, %v1514, 0
        %1548 = vmatprep.subr.bf16.mxu0 0
        %1549 = vmatpush1.bf16.msra.mxu0 0
        %1550 = vmatprep.subr.bf16.mxu0 0
        %1551 = vmatpush1.bf16.msra.mxu0 0
        %1552 = vmatprep.subr.bf16.mxu0 0
        %1553 = vmatpush1.bf16.msra.mxu0 0
        %1554 = vmatprep.subr.bf16.mxu0 0
        %1555 = vmatpush1.bf16.msra.mxu0 0
        %1556 = vmatprep.subr.bf16.mxu0 0
        %1557 = vmatpush1.bf16.msra.mxu0 %v1540
        %1558 = vmatprep.subr.bf16.mxu0 0
        %1559 = vmatpush1.bf16.msra.mxu0 %v1539
        %1560 = vmatprep.subr.bf16.mxu0 0
        %1561 = vmatpush1.bf16.msra.mxu0 %v1538
        %1562 = vmatprep.subr.bf16.mxu0 0
        %1563 = vmatpush1.bf16.msra.mxu0 %v1537
        %1564 = vmatprep.subr.bf16.mxu0 0
        %1565 = vmatpush2.bf16.msra.mxu0 0
        %1566 = vmatprep.subr.bf16.mxu0 0
        %1567 = vmatpush2.bf16.msra.mxu0 0
        %1568 = vmatprep.subr.bf16.mxu0 0
        %1569 = vmatpush2.bf16.msra.mxu0 0
        %1570 = vmatprep.subr.bf16.mxu0 0
        %1571 = vmatpush2.bf16.msra.mxu0 0
        %1572 = vmatprep.subr.bf16.mxu0 0
        %1573 = vmatpush2.bf16.msra.mxu0 0
        %1574 = vmatprep.subr.bf16.mxu0 0
        %1575 = vmatpush2.bf16.msra.mxu0 0
        %1576 = vmatprep.subr.bf16.mxu0 0
        %1577 = vmatpush2.bf16.msra.mxu0 0
        %1578 = vmatprep.subr.bf16.mxu0 0
        %1579 = vmatpush2.bf16.msra.mxu0 0
        %1580 = vmatprep.mubr.bf16.mxu0 0
        %1581 = vmatmul.mubr.bf16.gmra.mxu0 %v1546
        %v1582 = vpop.f32.mrf.mxu0
        %v1583 = vadd.f32 %v1519, %v1582
        %v1584 = vpop.f32.mrf.mxu0
        %v1585 = vpop.f32.mrf.mxu0
        %v1586 = vpop.f32.mrf.mxu0
        %1587 = vdwg.mxu0
        %v1588 = vadd.f32 %v1583, %v1231
        %v1589 = vsel %vm817, %v1588, 0.0
        %1590 = vadd.xlane.f32.xlu0 %v1589
        %v1591 = vpop.xlane.xlu0 %1590
        %v1592 = vmul.f32 %v1591, %v1201
        %v1593 = vsub.f32 %v1588, %v1592
        %v1594 = vmul.f32 %v1593, %v1593
        %v1595 = vsel %vm817, %v1594, 0.0
        %1596 = vadd.xlane.f32.xlu0 %v1595
        %v1597 = vpop.xlane.xlu0 %1596
        %v1598 = vmul.f32 %v1597, %v1201
        %v1599 = vadd.f32 %v1598, 1e-05
        %v1600 = vrsqrt.pop %v1599
        %v1601 = vmul.f32 %v1593, %v1600
        %v1603 = vlaneseq
        %v1604 = vshrl.u32 %v1603, 7
        %v1605 = vsub.s32 0, %v1604
        %v1606 = vrot.slane %v791, %v1605
        %v1608 = vmul.f32 %v1601, %v1606
        %v1610 = vlaneseq
        %v1611 = vshrl.u32 %v1610, 7
        %v1612 = vsub.s32 0, %v1611
        %v1613 = vrot.slane %v792, %v1612
        %v1615 = vadd.f32 %v1608, %v1613
        %v1616 = vmul.f32 %v1615, %v1229
        %1617 = vst.msk [vmem:[%s669] sm:$0xff] %vm817, %v1616
        %s1618 = sand.u32 %s439, 1
        %s1619 = scalar_lea.sflag [#allocation3], %s1618
        %s1620 = sand.u32 %s439, 1
        %s1621 = smul.addr %s1620, 8
        %s1622 = scalar_lea.vmem [#allocation2], %s1621
        // Predicated region
        $region85: #{tpu_custom_call.1} parent=79 // pred_check
          %p1623 = pneg %p449
        $region86: #{tpu_custom_call.1} parent=79 // pred_check_branch
          %1625 = sbr.rel (%p1623) target = $region88
        $region87: #{tpu_custom_call.1} parent=79 // pred_region
          %s1627 = ssub.s32 128, 128
          %1628 = vsyncadd %s1619, %s1627
          %s1629 = smul.addr %s33, 128
          %s1630 = scalar_lea.hbm %s15, %s1629
          %s1632 = sshll.u32 %s1622, 4
          %s1633 = int_to_ptr.vmem [resolvable:$true] %s1632
          %1635 = dma.vmem_to_hbm [thread:$0]  %s1633, 128, %s1630, %s1619
        $region88: #{tpu_custom_call.1} parent=79 // pred_fallthru
          _
      $region80: #{tpu_custom_call.1} parent=5 // pred_fallthru
        _
      %p1636 = scmp.le.s32.totalorder 2, %s24
      // Predicated region
      $region89: #{tpu_custom_call.1} parent=5 // pred_check
        %p1637 = pneg %p1636
      $region90: #{tpu_custom_call.1} parent=5 // pred_check_branch
        %1639 = sbr.rel (%p1637) target = $region92
      $region91: #{tpu_custom_call.1} parent=5 // pred_region
        %s1640 = ssub.s32 %s24, 2
        // Predicated region
        $region93: #{tpu_custom_call.1} parent=91 // pred_check
          %p1641 = pneg %p455
        $region94: #{tpu_custom_call.1} parent=91 // pred_check_branch
          %1643 = sbr.rel (%p1641) target = $region96
        $region95: #{tpu_custom_call.1} parent=91 // pred_region
          %s1644 = sand.u32 %s440, 1
          %s1645 = scalar_lea.sflag [#allocation3], %s1644
          %s1646 = sand.u32 %s440, 1
          %s1647 = smul.addr %s1646, 8
          %s1648 = scalar_lea.vmem [#allocation2], %s1647
          %1649 = dma.done %s1645, 128
        $region96: #{tpu_custom_call.1} parent=91 // pred_fallthru
          _
      $region92: #{tpu_custom_call.1} parent=5 // pred_fallthru
        _
    $region6: #{tpu_custom_call.1} parent=1 // loop_footer
      %s28 = sadd.s32 1, %s24
    $region7: #{tpu_custom_call.1} parent=1 // loop_footer_branch
      %23 = sbr.rel target = $region3
    $region8: #{tpu_custom_call.1} parent=1 // loop_exit
      _
    %1650 = vsyncpa [#allocation3], 1
    %s1651 = scalar_lea.sflag [#allocation3], 1
    %1652 = vsyncpa %s1651, 1

</llo_original>
